<compile_context>
chip_gen: v6e
topology: v6e:2x2x1
jax: 0.10.0
libtpu: 0.0.40
codegen_flags: <defaults>
</compile_context>

<pallas_src>
import math
from functools import partial

import jax
import jax.numpy as jnp
from jax import lax
from jax.experimental import pallas as pl
from jax.experimental.pallas import tpu as pltpu

EPS = 1e-5
MXU_DTYPE = jnp.bfloat16          # MXU operand dtype (f32 accumulation kept)
APPROX_RECIP = True               # EUP approx reciprocal for softmax denominator
_CHUNK_VMEM_BUDGET = 4 * 1024 * 1024   # per-chunk f32 intermediate budget (bytes)


# ----------------------------- in-kernel helpers -----------------------------

def _gelu_exact(x):
    # torch.nn.GELU() default: exact erf formulation (f32).
    return 0.5 * x * (1.0 + lax.erf(x * (1.0 / math.sqrt(2.0))))


def _bn_stats(y3):
    # nn.BatchNorm1d(q_len) on (bs, q_len, d_model): channel axis = q_len,
    # training-mode batch statistics over (batch, d_model), biased variance.
    # Two-pass (mean, then centered second moment) for numerical parity.
    m = jnp.mean(y3, axis=(0, 2), keepdims=True)          # (1, q_len, 1)
    c = y3 - m
    v = jnp.mean(c * c, axis=(0, 2), keepdims=True)
    return m, v


# --------------------------------- kernel ------------------------------------

def _tst_layers_kernel(
    # inputs ------------------------------------------------------------------
    u_ref,        # (N, d_model)                  f32   pre-projected input (layer 0)
    wqkv_ref,     # (1, d_model, H*(2*d_k+d_v))   bf16  [W_Q | W_K | W_V], head-major
    wo_ref,       # (1, H*d_v, d_model)           bf16
    w1_ref,       # (1, d_model, d_ff)            bf16
    w2_ref,       # (1, d_ff, d_model)            bf16
    bn_ref,       # (1, q_len, 4)                 f32   [g1 | b1 | g2 | b2]
    bias_ref,     # (1, 1, d_ff + d_model)        f32   [b1_ffn | b2_ffn]
    # output ------------------------------------------------------------------
    z_ref,        # (N, d_model) f32  -- revisited block: the RESIDENT activation
    # scratch -----------------------------------------------------------------
    buf_ref,      # (N, d_model) f32  -- pre-BatchNorm residual buffer
    *, bs, q_len, n_heads, d_k, d_v, attn_chunk, ffn_chunk,
):
    n = bs * q_len
    d_model = wqkv_ref.shape[1]
    d_ff = w1_ref.shape[2]
    koff = n_heads * d_k
    voff = 2 * n_heads * d_k
    inv_sqrt_dk = 1.0 / math.sqrt(d_k)

    # ---- layer-0 prologue: adopt the pre-projected input as resident state ----
    @pl.when(pl.program_id(0) == 0)
    def _():
        z_ref[...] = u_ref[...]

    bn = bn_ref[0]                                           # (q_len, 4)
    g1, be1, g2, be2 = bn[:, 0:1], bn[:, 1:2], bn[:, 2:3], bn[:, 3:4]
    b1 = bias_ref[0, :, 0:d_ff]                              # (1, d_ff)
    b2 = bias_ref[0, :, d_ff:d_ff + d_model]                 # (1, d_model)

    # ---- multi-head self-attention, chunked over batch ------------------------
    # buf <- src + MHA(src).  Chunking caps the (chunk, q, q) scores working set
    # (mandatory at production shapes on v7x's 64 MiB VMEM) while BatchNorm
    # statistics remain global over the whole batch.
    for b0 in range(0, bs, attn_chunk):
        cb = min(attn_chunk, bs - b0)
        nr = cb * q_len
        rows = pl.ds(b0 * q_len, nr)
        # fused QKV projection for this chunk: ONE GEMM on the MXU
        qkv = jnp.dot(z_ref[rows, :].astype(MXU_DTYPE), wqkv_ref[0],
                      preferred_element_type=jnp.float32)    # (nr, H*(2dk+dv)) f32
        acc = None
        for h in range(n_heads):
            qc = (qkv[:, h * d_k:(h + 1) * d_k]
                  .reshape(cb, q_len, d_k).astype(MXU_DTYPE))
            kc = (qkv[:, koff + h * d_k: koff + (h + 1) * d_k]
                  .reshape(cb, q_len, d_k).astype(MXU_DTYPE))
            vc = (qkv[:, voff + h * d_v: voff + (h + 1) * d_v]
                  .reshape(cb, q_len, d_v).astype(MXU_DTYPE))
            s = jnp.einsum('bqd,bkd->bqk', qc, kc,
                           preferred_element_type=jnp.float32) * inv_sqrt_dk
            s = s - jnp.max(s, axis=-1, keepdims=True)
            e = jnp.exp(s)
            denom = jnp.sum(e, axis=-1, keepdims=True)       # (cb, q, 1)
            ctx = jnp.einsum('bqk,bkd->bqd', e.astype(MXU_DTYPE), vc,
                             preferred_element_type=jnp.float32)
            # Normalize AFTER the AV matmul: d_v-wide multiply, EUP reciprocal.
            ctx = ctx * pl.reciprocal(denom, approx=APPROX_RECIP)
            # Per-head W_O accumulation: sublane-aligned row slab of W_O,
            # lane-dense (d_model-wide) partial GEMM -- no ctx re-assembly loop.
            part = jnp.dot(ctx.reshape(nr, d_v).astype(MXU_DTYPE),
                           wo_ref[0, h * d_v:(h + 1) * d_v, :],
                           preferred_element_type=jnp.float32)
            acc = part if acc is None else acc + part
        # residual add fused into the chunk store (res_dropout = identity)
        buf_ref[rows, :] = z_ref[rows, :] + acc

    # ---- BatchNorm1d(q_len) #1: global batch statistics -----------------------
    m1, v1 = _bn_stats(buf_ref[...].reshape(bs, q_len, d_model))
    sc1 = g1[None] * lax.rsqrt(v1 + EPS)                     # (1, q_len, 1)
    sh1 = be1[None] - m1 * sc1                               # bn(x) = x*sc1 + sh1

    # ---- position-wise FFN (Linear -> erf-GELU -> Linear), chunked over batch -
    # BN1's normalization is applied per chunk in affine form (stats above are
    # global); chunking bounds the (rows, d_ff) intermediate.
    for b0 in range(0, bs, ffn_chunk):
        cb = min(ffn_chunk, bs - b0)
        nr = cb * q_len
        rows = pl.ds(b0 * q_len, nr)
        y = (buf_ref[rows, :].reshape(cb, q_len, d_model) * sc1 + sh1
             ).reshape(nr, d_model)
        h1 = jnp.dot(y.astype(MXU_DTYPE), w1_ref[0],
                     preferred_element_type=jnp.float32) + b1
        h1 = _gelu_exact(h1)
        f = jnp.dot(h1.astype(MXU_DTYPE), w2_ref[0],
                    preferred_element_type=jnp.float32) + b2
        buf_ref[rows, :] = y + f                             # residual (dropout = id)

    # ---- BatchNorm1d(q_len) #2 -> new resident activation ---------------------
    y2 = buf_ref[...].reshape(bs, q_len, d_model)
    m2, v2 = _bn_stats(y2)
    z_ref[...] = ((y2 - m2) * (g2[None] * lax.rsqrt(v2 + EPS)) + be2[None]
                  ).reshape(n, d_model)
    # TODO(synk): on v7x, split the batch-chunk loops across the two TensorCores
    # (core_map + core_barrier before the BN reductions) to use the second core.


# -------------------------------- wrapper -------------------------------------

def _vmem_limit_bytes():
    cap = 64 * 1024 * 1024                    # conservative fallback (v7x per-core)
    try:
        cap = int(pltpu.get_tpu_info().vmem_capacity_bytes)
    except Exception:
        pass
    # ~56 MiB on v7x (64 MiB physical), capped at ~100 MiB on v5e/v6e (128 MiB).
    return min((cap * 7) // 8, 100 * 1024 * 1024)


def transformer_tsai_forward(x, params, *, n_heads, d_k, d_v, c_out):
    bs, q_len, c_in = x.shape
    d_model = params['wp'].shape[1]
    d_ff = params['w1'].shape[-1]
    n_layers = params['wqkv'].shape[0]
    n = bs * q_len
    h_qkv = n_heads * (2 * d_k + d_v)
    mx = lambda a: a.astype(MXU_DTYPE)

    # ---- input projection + positional encoding in the wrapper ---------------
    # (c_in-deep contraction; keeps x / W_P / pos out of per-layer VMEM residency)
    u = jnp.dot(x.reshape(n, c_in), params['wp'],
                preferred_element_type=jnp.float32) + params['bp']
    u = (u.reshape(bs, q_len, d_model) + params['w_pos'][None]).reshape(n, d_model)

    # ---- chunk sizes: cap per-chunk f32 intermediates (scores / h1) ----------
    attn_chunk = max(1, min(bs, _CHUNK_VMEM_BUDGET // max(1, q_len * q_len * 8)))
    ffn_chunk = max(1, min(bs, _CHUNK_VMEM_BUDGET // max(1, q_len * d_ff * 8)))

    kernel = partial(_tst_layers_kernel, bs=bs, q_len=q_len, n_heads=n_heads,
                     d_k=d_k, d_v=d_v, attn_chunk=attn_chunk, ffn_chunk=ffn_chunk)

    per_layer = lambda l: (l, 0, 0)
    whole2 = lambda l: (0, 0)

    grid_spec = pltpu.PrefetchScalarGridSpec(
        num_scalar_prefetch=0,
        grid=(n_layers,),
        in_specs=[
            pl.BlockSpec((n, d_model), whole2),                     # u (read at layer 0)
            pl.BlockSpec((1, d_model, h_qkv), per_layer),           # fused QKV weights
            pl.BlockSpec((1, n_heads * d_v, d_model), per_layer),   # W_O
            pl.BlockSpec((1, d_model, d_ff), per_layer),            # W1
            pl.BlockSpec((1, d_ff, d_model), per_layer),            # W2
            pl.BlockSpec((1, q_len, 4), per_layer),                 # [g1|b1|g2|b2]
            pl.BlockSpec((1, 1, d_ff + d_model), per_layer),        # [b1_ffn|b2_ffn]
        ],
        out_specs=pl.BlockSpec((n, d_model), whole2),               # resident activation
        scratch_shapes=[pltpu.VMEM((n, d_model), jnp.float32)],     # pre-BN buffer
    )

    z = pl.pallas_call(
        kernel,
        out_shape=jax.ShapeDtypeStruct((n, d_model), jnp.float32),
        grid_spec=grid_spec,
        compiler_params=pltpu.CompilerParams(
            dimension_semantics=("arbitrary",),                     # layers are sequential
            vmem_limit_bytes=_vmem_limit_bytes()),
    )(u, mx(params['wqkv']), mx(params['wo']), mx(params['w1']), mx(params['w2']),
      params['bn_slab'], params['bias_slab'])

    # ---- Flatten + c_out x (ReLU -> Linear) heads: ONE lane-dense GEMM --------
    # TODO(synk): the Flatten re-lanes q_len*d_model (no cheap in-kernel Mosaic
    # reshape), so this single head GEMM is issued as one XLA dot here; at large
    # head_nf it should additionally be K-tiled.
    zf = z.reshape(bs, q_len * d_model)                             # Flatten()
    logits = jnp.dot(jnp.maximum(zf, 0.0).astype(MXU_DTYPE), mx(params['head_w']),
                     preferred_element_type=jnp.float32) + params['head_b']
    # torch.stack(out, 0).permute(1, 2, 0) -> (bs, seq_len, c_out)
    return logits.reshape(bs, c_out, q_len).transpose(0, 2, 1)


# -------------------------- deterministic parameters --------------------------

def init_params(key, *, c_in, c_out, seq_len, d_model, n_heads, d_k, d_v, d_ff,
                n_layers):
    q_len = seq_len
    head_nf = q_len * d_model
    keys = iter(jax.random.split(key, 12))

    def w(shape, scale):
        return jax.random.normal(next(keys), shape, jnp.float32) * scale

    bn_g = jnp.ones((n_layers, q_len, 1), jnp.float32)      # torch BN affine init
    bn_b = jnp.zeros((n_layers, q_len, 1), jnp.float32)
    b1 = w((n_layers, 1, d_ff), 0.02)
    b2 = w((n_layers, 1, d_model), 0.02)

    return {
        'wp': w((c_in, d_model), 1.0 / math.sqrt(c_in)),
        'bp': w((1, d_model), 0.02),
        'w_pos': jnp.zeros((q_len, d_model), jnp.float32),   # torch init: zeros
        # Per-layer weights stacked along a leading n_layers axis.  The fused QKV
        # weight is [W_Q | W_K | W_V] with head-major column blocks, matching the
        # nn.Linear(d_model, n_heads*d_k) column layout of the PyTorch module.
        'wqkv': w((n_layers, d_model, n_heads * (2 * d_k + d_v)),
                  1.0 / math.sqrt(d_model)),
        'wo': w((n_layers, n_heads * d_v, d_model), 1.0 / math.sqrt(n_heads * d_v)),
        'w1': w((n_layers, d_model, d_ff), 1.0 / math.sqrt(d_model)),
        'w2': w((n_layers, d_ff, d_model), 1.0 / math.sqrt(d_ff)),
        # Packed per-layer "small tensor" slabs (one DMA each per layer step).
        'bn_slab': jnp.concatenate([bn_g, bn_b, bn_g, bn_b], axis=-1),  # (L,q_len,4)
        'bias_slab': jnp.concatenate([b1, b2], axis=-1),            # (L,1,d_ff+d_model)
        # Regression heads fc2_1..fc2_{c_out}: W_c^T concatenated column-wise.
        'head_w': w((head_nf, c_out * seq_len), 1.0 / math.sqrt(head_nf)),
        'head_b': w((1, c_out * seq_len), 0.02),
    }


# ----------------------------------- main --------------------------------------

if __name__ == "__main__":
    bs, c_in, c_out, seq_len = 2, 4, 3, 16
    d_model, n_heads, d_ff, n_layers = 32, 4, 64, 2
    d_k = d_v = d_model // n_heads

    key = jax.random.PRNGKey(0)
    k_x, k_p = jax.random.split(key)
    # layout: x is [bs, seq_len, c_in]  (the permute/transpose pair in the
    # PyTorch forward cancels, leaving Linear(c_in, d_model) over the last dim)
    x = jax.random.normal(k_x, (bs, seq_len, c_in), jnp.float32)

    params = init_params(k_p, c_in=c_in, c_out=c_out, seq_len=seq_len,
                         d_model=d_model, n_heads=n_heads, d_k=d_k, d_v=d_v,
                         d_ff=d_ff, n_layers=n_layers)

    fwd = jax.jit(partial(transformer_tsai_forward, n_heads=n_heads,
                          d_k=d_k, d_v=d_v, c_out=c_out))
    out = jax.block_until_ready(fwd(x, params))

    assert out.shape == (bs, seq_len, c_out), out.shape
    assert bool(jnp.all(jnp.isfinite(out)))
    print("KERNEL_OK")
</pallas_src>

<mosaic_0001>
module attributes {stable_mosaic.version = 11 : i64} {
  func.func @_tst_layers_kernel(%arg0: i32, %arg1: memref<32x32xf32, #tpu.memory_space<vmem>>, %arg2: memref<1x32x96xbf16, #tpu.memory_space<vmem>>, %arg3: memref<1x32x32xbf16, #tpu.memory_space<vmem>>, %arg4: memref<1x32x64xbf16, #tpu.memory_space<vmem>>, %arg5: memref<1x64x32xbf16, #tpu.memory_space<vmem>>, %arg6: memref<1x16x4xf32, #tpu.memory_space<vmem>>, %arg7: memref<1x1x96xf32, #tpu.memory_space<vmem>>, %arg8: memref<32x32xf32, #tpu.memory_space<vmem>>, %arg9: memref<32x32xf32, #tpu.memory_space<vmem>>) attributes {dimension_semantics = [#tpu.dimension_semantics<arbitrary>], iteration_bounds = array<i64: 2>, scalar_prefetch = 0 : i64, scratch_operands = 1 : i64, tpu.core_type = #tpu.core_type<tc>, window_params = [{pipeline_mode = #tpu.pipeline_mode<synchronous>, transform_indices = @transform_0, window_bounds = array<i64: 32, 32>}, {transform_indices = @transform_1, window_bounds = array<i64: 1, 32, 96>}, {transform_indices = @transform_2, window_bounds = array<i64: 1, 32, 32>}, {transform_indices = @transform_3, window_bounds = array<i64: 1, 32, 64>}, {transform_indices = @transform_4, window_bounds = array<i64: 1, 64, 32>}, {transform_indices = @transform_5, window_bounds = array<i64: 1, 16, 4>}, {transform_indices = @transform_6, window_bounds = array<i64: 1, 1, 96>}, {pipeline_mode = #tpu.pipeline_mode<synchronous>, transform_indices = @transform_7, window_bounds = array<i64: 32, 32>}]} {
    %c0_i32 = arith.constant 0 : i32
    %0 = arith.cmpi eq, %arg0, %c0_i32 : i32
    %1 = arith.extui %0 : i1 to i32
    %c0_i32_0 = arith.constant 0 : i32
    %2 = arith.cmpi ne, %1, %c0_i32_0 : i32
    scf.if %2 {
      %c0_81 = arith.constant 0 : index
      %c0_82 = arith.constant 0 : index
      %217 = vector.load %arg1[%c0_81, %c0_82] : memref<32x32xf32, #tpu.memory_space<vmem>>, vector<32x32xf32>
      %c0_83 = arith.constant 0 : index
      %c0_84 = arith.constant 0 : index
      %218 = vector.load %arg8[%c0_83, %c0_84] : memref<32x32xf32, #tpu.memory_space<vmem>>, vector<32x32xf32>
      tpu.vector_store %arg8[%c0_83, %c0_84], %217 {strides = array<i32>} : memref<32x32xf32, #tpu.memory_space<vmem>>, vector<32x32xf32>,
    } else {
    }
    %c0 = arith.constant 0 : index
    %c0_1 = arith.constant 0 : index
    %c0_2 = arith.constant 0 : index
    %3 = vector.load %arg6[%c0, %c0_1, %c0_2] : memref<1x16x4xf32, #tpu.memory_space<vmem>>, vector<1x16x4xf32>
    %4 = vector.shape_cast %3 : vector<1x16x4xf32> to vector<16x4xf32>
    %5 = vector.extract_strided_slice %4 {offsets = [0, 0], sizes = [16, 1], strides = [1, 1]} : vector<16x4xf32> to vector<16x1xf32>
    %6 = vector.extract_strided_slice %4 {offsets = [0, 1], sizes = [16, 1], strides = [1, 1]} : vector<16x4xf32> to vector<16x1xf32>
    %7 = vector.extract_strided_slice %4 {offsets = [0, 2], sizes = [16, 1], strides = [1, 1]} : vector<16x4xf32> to vector<16x1xf32>
    %8 = vector.extract_strided_slice %4 {offsets = [0, 3], sizes = [16, 1], strides = [1, 1]} : vector<16x4xf32> to vector<16x1xf32>
    %c0_3 = arith.constant 0 : index
    %c0_4 = arith.constant 0 : index
    %c0_5 = arith.constant 0 : index
    %9 = vector.load %arg7[%c0_3, %c0_4, %c0_5] : memref<1x1x96xf32, #tpu.memory_space<vmem>>, vector<1x1x64xf32>
    %10 = vector.shape_cast %9 : vector<1x1x64xf32> to vector<1x64xf32>
    %c0_6 = arith.constant 0 : index
    %c0_7 = arith.constant 0 : index
    %c64 = arith.constant 64 : index
    %11 = vector.load %arg7[%c0_6, %c0_7, %c64] : memref<1x1x96xf32, #tpu.memory_space<vmem>>, vector<1x1x32xf32>
    %12 = vector.shape_cast %11 : vector<1x1x32xf32> to vector<1x32xf32>
    %c0_8 = arith.constant 0 : index
    %c0_9 = arith.constant 0 : index
    %13 = vector.load %arg8[%c0_8, %c0_9] : memref<32x32xf32, #tpu.memory_space<vmem>>, vector<32x32xf32>
    %14 = arith.truncf %13 : vector<32x32xf32> to vector<32x32xbf16>
    %c0_10 = arith.constant 0 : index
    %c0_11 = arith.constant 0 : index
    %c0_12 = arith.constant 0 : index
    %15 = vector.load %arg2[%c0_10, %c0_11, %c0_12] : memref<1x32x96xbf16, #tpu.memory_space<vmem>>, vector<1x32x96xbf16>
    %16 = vector.shape_cast %15 : vector<1x32x96xbf16> to vector<32x96xbf16>
    %cst = arith.constant dense<0.000000e+00> : vector<32x96xf32>
    %17 = tpu.matmul %14, %16, %cst {dimension_numbers = #tpu.dot_dimension_numbers<[1], [0], [0], [1], [0, 0, 1, 1], [], []>} : vector<32x32xbf16>, vector<32x96xbf16>, vector<32x96xf32> -> vector<32x96xf32>
    %18 = vector.extract_strided_slice %17 {offsets = [0, 0], sizes = [32, 8], strides = [1, 1]} : vector<32x96xf32> to vector<32x8xf32>
    %19 = vector.shape_cast %18 : vector<32x8xf32> to vector<2x16x8xf32>
    %20 = arith.truncf %19 : vector<2x16x8xf32> to vector<2x16x8xbf16>
    %21 = vector.extract_strided_slice %17 {offsets = [0, 32], sizes = [32, 8], strides = [1, 1]} : vector<32x96xf32> to vector<32x8xf32>
    %22 = vector.shape_cast %21 : vector<32x8xf32> to vector<2x16x8xf32>
    %23 = arith.truncf %22 : vector<2x16x8xf32> to vector<2x16x8xbf16>
    %24 = vector.extract_strided_slice %17 {offsets = [0, 64], sizes = [32, 8], strides = [1, 1]} : vector<32x96xf32> to vector<32x8xf32>
    %25 = vector.shape_cast %24 : vector<32x8xf32> to vector<2x16x8xf32>
    %26 = arith.truncf %25 : vector<2x16x8xf32> to vector<2x16x8xbf16>
    "tpu.trace_start"() <{level = 10 : i32, message = "bqd,bkd->bqk"}> : () -> ()
    %cst_13 = arith.constant dense<0.000000e+00> : vector<2x16x16xf32>
    %27 = tpu.matmul %20, %23, %cst_13 {dimension_numbers = #tpu.dot_dimension_numbers<[2], [2], [1], [1], [0, 0, 0, 1, 1, 1], [0], [0]>} : vector<2x16x8xbf16>, vector<2x16x8xbf16>, vector<2x16x16xf32> -> vector<2x16x16xf32>
    "tpu.trace_stop"() : () -> ()
    %cst_14 = arith.constant 0.353553385 : f32
    %28 = vector.broadcast %cst_14 : f32 to vector<2x16x16xf32>
    %29 = arith.mulf %27, %28 : vector<2x16x16xf32>
    %cst_15 = arith.constant dense<0xFF800000> : vector<2x16xf32>
    %30 = vector.multi_reduction <maximumf>, %29, %cst_15 [2] : vector<2x16x16xf32> to vector<2x16xf32>
    %31 = vector.shape_cast %30 : vector<2x16xf32> to vector<2x16x1xf32>
    %32 = vector.broadcast %31 : vector<2x16x1xf32> to vector<2x16x16xf32>
    %33 = arith.subf %29, %32 : vector<2x16x16xf32>
    %34 = math.exp %33 : vector<2x16x16xf32>
    %cst_16 = arith.constant dense<0.000000e+00> : vector<2x16xf32>
    %35 = vector.multi_reduction <add>, %34, %cst_16 [2] : vector<2x16x16xf32> to vector<2x16xf32>
    %36 = vector.shape_cast %35 : vector<2x16xf32> to vector<2x16x1xf32>
    %37 = arith.truncf %34 : vector<2x16x16xf32> to vector<2x16x16xbf16>
    "tpu.trace_start"() <{level = 10 : i32, message = "bqk,bkd->bqd"}> : () -> ()
    %cst_17 = arith.constant dense<0.000000e+00> : vector<2x16x8xf32>
    %38 = tpu.matmul %37, %26, %cst_17 {dimension_numbers = #tpu.dot_dimension_numbers<[2], [1], [1], [2], [0, 0, 0, 1, 1, 2], [0], [0]>} : vector<2x16x16xbf16>, vector<2x16x8xbf16>, vector<2x16x8xf32> -> vector<2x16x8xf32>
    "tpu.trace_stop"() : () -> ()
    %39 = tpu.reciprocal %36 {approx = true} : vector<2x16x1xf32> -> vector<2x16x1xf32>
    %40 = vector.broadcast %39 : vector<2x16x1xf32> to vector<2x16x8xf32>
    %41 = arith.mulf %38, %40 : vector<2x16x8xf32>
    %42 = vector.shape_cast %41 : vector<2x16x8xf32> to vector<32x8xf32>
    %43 = arith.truncf %42 : vector<32x8xf32> to vector<32x8xbf16>
    %c0_18 = arith.constant 0 : index
    %c0_19 = arith.constant 0 : index
    %c0_20 = arith.constant 0 : index
    %44 = vector.load %arg3[%c0_18, %c0_19, %c0_20] : memref<1x32x32xbf16, #tpu.memory_space<vmem>>, vector<1x8x32xbf16>
    %45 = vector.shape_cast %44 : vector<1x8x32xbf16> to vector<8x32xbf16>
    %cst_21 = arith.constant dense<0.000000e+00> : vector<32x32xf32>
    %46 = tpu.matmul %43, %45, %cst_21 {dimension_numbers = #tpu.dot_dimension_numbers<[1], [0], [0], [1], [0, 0, 1, 1], [], []>} : vector<32x8xbf16>, vector<8x32xbf16>, vector<32x32xf32> -> vector<32x32xf32>
    %47 = vector.extract_strided_slice %17 {offsets = [0, 8], sizes = [32, 8], strides = [1, 1]} : vector<32x96xf32> to vector<32x8xf32>
    %48 = vector.shape_cast %47 : vector<32x8xf32> to vector<2x16x8xf32>
    %49 = arith.truncf %48 : vector<2x16x8xf32> to vector<2x16x8xbf16>
    %50 = vector.extract_strided_slice %17 {offsets = [0, 40], sizes = [32, 8], strides = [1, 1]} : vector<32x96xf32> to vector<32x8xf32>
    %51 = vector.shape_cast %50 : vector<32x8xf32> to vector<2x16x8xf32>
    %52 = arith.truncf %51 : vector<2x16x8xf32> to vector<2x16x8xbf16>
    %53 = vector.extract_strided_slice %17 {offsets = [0, 72], sizes = [32, 8], strides = [1, 1]} : vector<32x96xf32> to vector<32x8xf32>
    %54 = vector.shape_cast %53 : vector<32x8xf32> to vector<2x16x8xf32>
    %55 = arith.truncf %54 : vector<2x16x8xf32> to vector<2x16x8xbf16>
    "tpu.trace_start"() <{level = 10 : i32, message = "bqd,bkd->bqk"}> : () -> ()
    %cst_22 = arith.constant dense<0.000000e+00> : vector<2x16x16xf32>
    %56 = tpu.matmul %49, %52, %cst_22 {dimension_numbers = #tpu.dot_dimension_numbers<[2], [2], [1], [1], [0, 0, 0, 1, 1, 1], [0], [0]>} : vector<2x16x8xbf16>, vector<2x16x8xbf16>, vector<2x16x16xf32> -> vector<2x16x16xf32>
    "tpu.trace_stop"() : () -> ()
    %cst_23 = arith.constant 0.353553385 : f32
    %57 = vector.broadcast %cst_23 : f32 to vector<2x16x16xf32>
    %58 = arith.mulf %56, %57 : vector<2x16x16xf32>
    %cst_24 = arith.constant dense<0xFF800000> : vector<2x16xf32>
    %59 = vector.multi_reduction <maximumf>, %58, %cst_24 [2] : vector<2x16x16xf32> to vector<2x16xf32>
    %60 = vector.shape_cast %59 : vector<2x16xf32> to vector<2x16x1xf32>
    %61 = vector.broadcast %60 : vector<2x16x1xf32> to vector<2x16x16xf32>
    %62 = arith.subf %58, %61 : vector<2x16x16xf32>
    %63 = math.exp %62 : vector<2x16x16xf32>
    %cst_25 = arith.constant dense<0.000000e+00> : vector<2x16xf32>
    %64 = vector.multi_reduction <add>, %63, %cst_25 [2] : vector<2x16x16xf32> to vector<2x16xf32>
    %65 = vector.shape_cast %64 : vector<2x16xf32> to vector<2x16x1xf32>
    %66 = arith.truncf %63 : vector<2x16x16xf32> to vector<2x16x16xbf16>
    "tpu.trace_start"() <{level = 10 : i32, message = "bqk,bkd->bqd"}> : () -> ()
    %cst_26 = arith.constant dense<0.000000e+00> : vector<2x16x8xf32>
    %67 = tpu.matmul %66, %55, %cst_26 {dimension_numbers = #tpu.dot_dimension_numbers<[2], [1], [1], [2], [0, 0, 0, 1, 1, 2], [0], [0]>} : vector<2x16x16xbf16>, vector<2x16x8xbf16>, vector<2x16x8xf32> -> vector<2x16x8xf32>
    "tpu.trace_stop"() : () -> ()
    %68 = tpu.reciprocal %65 {approx = true} : vector<2x16x1xf32> -> vector<2x16x1xf32>
    %69 = vector.broadcast %68 : vector<2x16x1xf32> to vector<2x16x8xf32>
    %70 = arith.mulf %67, %69 : vector<2x16x8xf32>
    %71 = vector.shape_cast %70 : vector<2x16x8xf32> to vector<32x8xf32>
    %72 = arith.truncf %71 : vector<32x8xf32> to vector<32x8xbf16>
    %c0_27 = arith.constant 0 : index
    %c8 = arith.constant 8 : index
    %c0_28 = arith.constant 0 : index
    %73 = vector.load %arg3[%c0_27, %c8, %c0_28] : memref<1x32x32xbf16, #tpu.memory_space<vmem>>, vector<1x8x32xbf16>
    %74 = vector.shape_cast %73 : vector<1x8x32xbf16> to vector<8x32xbf16>
    %cst_29 = arith.constant dense<0.000000e+00> : vector<32x32xf32>
    %75 = tpu.matmul %72, %74, %cst_29 {dimension_numbers = #tpu.dot_dimension_numbers<[1], [0], [0], [1], [0, 0, 1, 1], [], []>} : vector<32x8xbf16>, vector<8x32xbf16>, vector<32x32xf32> -> vector<32x32xf32>
    %76 = arith.addf %46, %75 : vector<32x32xf32>
    %77 = vector.extract_strided_slice %17 {offsets = [0, 16], sizes = [32, 8], strides = [1, 1]} : vector<32x96xf32> to vector<32x8xf32>
    %78 = vector.shape_cast %77 : vector<32x8xf32> to vector<2x16x8xf32>
    %79 = arith.truncf %78 : vector<2x16x8xf32> to vector<2x16x8xbf16>
    %80 = vector.extract_strided_slice %17 {offsets = [0, 48], sizes = [32, 8], strides = [1, 1]} : vector<32x96xf32> to vector<32x8xf32>
    %81 = vector.shape_cast %80 : vector<32x8xf32> to vector<2x16x8xf32>
    %82 = arith.truncf %81 : vector<2x16x8xf32> to vector<2x16x8xbf16>
    %83 = vector.extract_strided_slice %17 {offsets = [0, 80], sizes = [32, 8], strides = [1, 1]} : vector<32x96xf32> to vector<32x8xf32>
    %84 = vector.shape_cast %83 : vector<32x8xf32> to vector<2x16x8xf32>
    %85 = arith.truncf %84 : vector<2x16x8xf32> to vector<2x16x8xbf16>
    "tpu.trace_start"() <{level = 10 : i32, message = "bqd,bkd->bqk"}> : () -> ()
    %cst_30 = arith.constant dense<0.000000e+00> : vector<2x16x16xf32>
    %86 = tpu.matmul %79, %82, %cst_30 {dimension_numbers = #tpu.dot_dimension_numbers<[2], [2], [1], [1], [0, 0, 0, 1, 1, 1], [0], [0]>} : vector<2x16x8xbf16>, vector<2x16x8xbf16>, vector<2x16x16xf32> -> vector<2x16x16xf32>
    "tpu.trace_stop"() : () -> ()
    %cst_31 = arith.constant 0.353553385 : f32
    %87 = vector.broadcast %cst_31 : f32 to vector<2x16x16xf32>
    %88 = arith.mulf %86, %87 : vector<2x16x16xf32>
    %cst_32 = arith.constant dense<0xFF800000> : vector<2x16xf32>
    %89 = vector.multi_reduction <maximumf>, %88, %cst_32 [2] : vector<2x16x16xf32> to vector<2x16xf32>
    %90 = vector.shape_cast %89 : vector<2x16xf32> to vector<2x16x1xf32>
    %91 = vector.broadcast %90 : vector<2x16x1xf32> to vector<2x16x16xf32>
    %92 = arith.subf %88, %91 : vector<2x16x16xf32>
    %93 = math.exp %92 : vector<2x16x16xf32>
    %cst_33 = arith.constant dense<0.000000e+00> : vector<2x16xf32>
    %94 = vector.multi_reduction <add>, %93, %cst_33 [2] : vector<2x16x16xf32> to vector<2x16xf32>
    %95 = vector.shape_cast %94 : vector<2x16xf32> to vector<2x16x1xf32>
    %96 = arith.truncf %93 : vector<2x16x16xf32> to vector<2x16x16xbf16>
    "tpu.trace_start"() <{level = 10 : i32, message = "bqk,bkd->bqd"}> : () -> ()
    %cst_34 = arith.constant dense<0.000000e+00> : vector<2x16x8xf32>
    %97 = tpu.matmul %96, %85, %cst_34 {dimension_numbers = #tpu.dot_dimension_numbers<[2], [1], [1], [2], [0, 0, 0, 1, 1, 2], [0], [0]>} : vector<2x16x16xbf16>, vector<2x16x8xbf16>, vector<2x16x8xf32> -> vector<2x16x8xf32>
    "tpu.trace_stop"() : () -> ()
    %98 = tpu.reciprocal %95 {approx = true} : vector<2x16x1xf32> -> vector<2x16x1xf32>
    %99 = vector.broadcast %98 : vector<2x16x1xf32> to vector<2x16x8xf32>
    %100 = arith.mulf %97, %99 : vector<2x16x8xf32>
    %101 = vector.shape_cast %100 : vector<2x16x8xf32> to vector<32x8xf32>
    %102 = arith.truncf %101 : vector<32x8xf32> to vector<32x8xbf16>
    %c0_35 = arith.constant 0 : index
    %c16 = arith.constant 16 : index
    %c0_36 = arith.constant 0 : index
    %103 = vector.load %arg3[%c0_35, %c16, %c0_36] : memref<1x32x32xbf16, #tpu.memory_space<vmem>>, vector<1x8x32xbf16>
    %104 = vector.shape_cast %103 : vector<1x8x32xbf16> to vector<8x32xbf16>
    %cst_37 = arith.constant dense<0.000000e+00> : vector<32x32xf32>
    %105 = tpu.matmul %102, %104, %cst_37 {dimension_numbers = #tpu.dot_dimension_numbers<[1], [0], [0], [1], [0, 0, 1, 1], [], []>} : vector<32x8xbf16>, vector<8x32xbf16>, vector<32x32xf32> -> vector<32x32xf32>
    %106 = arith.addf %76, %105 : vector<32x32xf32>
    %107 = vector.extract_strided_slice %17 {offsets = [0, 24], sizes = [32, 8], strides = [1, 1]} : vector<32x96xf32> to vector<32x8xf32>
    %108 = vector.shape_cast %107 : vector<32x8xf32> to vector<2x16x8xf32>
    %109 = arith.truncf %108 : vector<2x16x8xf32> to vector<2x16x8xbf16>
    %110 = vector.extract_strided_slice %17 {offsets = [0, 56], sizes = [32, 8], strides = [1, 1]} : vector<32x96xf32> to vector<32x8xf32>
    %111 = vector.shape_cast %110 : vector<32x8xf32> to vector<2x16x8xf32>
    %112 = arith.truncf %111 : vector<2x16x8xf32> to vector<2x16x8xbf16>
    %113 = vector.extract_strided_slice %17 {offsets = [0, 88], sizes = [32, 8], strides = [1, 1]} : vector<32x96xf32> to vector<32x8xf32>
    %114 = vector.shape_cast %113 : vector<32x8xf32> to vector<2x16x8xf32>
    %115 = arith.truncf %114 : vector<2x16x8xf32> to vector<2x16x8xbf16>
    "tpu.trace_start"() <{level = 10 : i32, message = "bqd,bkd->bqk"}> : () -> ()
    %cst_38 = arith.constant dense<0.000000e+00> : vector<2x16x16xf32>
    %116 = tpu.matmul %109, %112, %cst_38 {dimension_numbers = #tpu.dot_dimension_numbers<[2], [2], [1], [1], [0, 0, 0, 1, 1, 1], [0], [0]>} : vector<2x16x8xbf16>, vector<2x16x8xbf16>, vector<2x16x16xf32> -> vector<2x16x16xf32>
    "tpu.trace_stop"() : () -> ()
    %cst_39 = arith.constant 0.353553385 : f32
    %117 = vector.broadcast %cst_39 : f32 to vector<2x16x16xf32>
    %118 = arith.mulf %116, %117 : vector<2x16x16xf32>
    %cst_40 = arith.constant dense<0xFF800000> : vector<2x16xf32>
    %119 = vector.multi_reduction <maximumf>, %118, %cst_40 [2] : vector<2x16x16xf32> to vector<2x16xf32>
    %120 = vector.shape_cast %119 : vector<2x16xf32> to vector<2x16x1xf32>
    %121 = vector.broadcast %120 : vector<2x16x1xf32> to vector<2x16x16xf32>
    %122 = arith.subf %118, %121 : vector<2x16x16xf32>
    %123 = math.exp %122 : vector<2x16x16xf32>
    %cst_41 = arith.constant dense<0.000000e+00> : vector<2x16xf32>
    %124 = vector.multi_reduction <add>, %123, %cst_41 [2] : vector<2x16x16xf32> to vector<2x16xf32>
    %125 = vector.shape_cast %124 : vector<2x16xf32> to vector<2x16x1xf32>
    %126 = arith.truncf %123 : vector<2x16x16xf32> to vector<2x16x16xbf16>
    "tpu.trace_start"() <{level = 10 : i32, message = "bqk,bkd->bqd"}> : () -> ()
    %cst_42 = arith.constant dense<0.000000e+00> : vector<2x16x8xf32>
    %127 = tpu.matmul %126, %115, %cst_42 {dimension_numbers = #tpu.dot_dimension_numbers<[2], [1], [1], [2], [0, 0, 0, 1, 1, 2], [0], [0]>} : vector<2x16x16xbf16>, vector<2x16x8xbf16>, vector<2x16x8xf32> -> vector<2x16x8xf32>
    "tpu.trace_stop"() : () -> ()
    %128 = tpu.reciprocal %125 {approx = true} : vector<2x16x1xf32> -> vector<2x16x1xf32>
    %129 = vector.broadcast %128 : vector<2x16x1xf32> to vector<2x16x8xf32>
    %130 = arith.mulf %127, %129 : vector<2x16x8xf32>
    %131 = vector.shape_cast %130 : vector<2x16x8xf32> to vector<32x8xf32>
    %132 = arith.truncf %131 : vector<32x8xf32> to vector<32x8xbf16>
    %c0_43 = arith.constant 0 : index
    %c24 = arith.constant 24 : index
    %c0_44 = arith.constant 0 : index
    %133 = vector.load %arg3[%c0_43, %c24, %c0_44] : memref<1x32x32xbf16, #tpu.memory_space<vmem>>, vector<1x8x32xbf16>
    %134 = vector.shape_cast %133 : vector<1x8x32xbf16> to vector<8x32xbf16>
    %cst_45 = arith.constant dense<0.000000e+00> : vector<32x32xf32>
    %135 = tpu.matmul %132, %134, %cst_45 {dimension_numbers = #tpu.dot_dimension_numbers<[1], [0], [0], [1], [0, 0, 1, 1], [], []>} : vector<32x8xbf16>, vector<8x32xbf16>, vector<32x32xf32> -> vector<32x32xf32>
    %136 = arith.addf %106, %135 : vector<32x32xf32>
    %c0_46 = arith.constant 0 : index
    %c0_47 = arith.constant 0 : index
    %137 = vector.load %arg8[%c0_46, %c0_47] : memref<32x32xf32, #tpu.memory_space<vmem>>, vector<32x32xf32>
    %138 = arith.addf %137, %136 : vector<32x32xf32>
    %c0_48 = arith.constant 0 : index
    %c0_49 = arith.constant 0 : index
    %139 = vector.load %arg9[%c0_48, %c0_49] : memref<32x32xf32, #tpu.memory_space<vmem>>, vector<32x32xf32>
    tpu.vector_store %arg9[%c0_48, %c0_49], %138 {strides = array<i32>} : memref<32x32xf32, #tpu.memory_space<vmem>>, vector<32x32xf32>,
    %c0_50 = arith.constant 0 : index
    %c0_51 = arith.constant 0 : index
    %140 = vector.load %arg9[%c0_50, %c0_51] : memref<32x32xf32, #tpu.memory_space<vmem>>, vector<32x32xf32>
    %141 = vector.shape_cast %140 : vector<32x32xf32> to vector<2x16x32xf32>
    %cst_52 = arith.constant dense<0.000000e+00> : vector<16xf32>
    %142 = vector.multi_reduction <add>, %141, %cst_52 [0, 2] : vector<2x16x32xf32> to vector<16xf32>
    %143 = vector.shape_cast %142 : vector<16xf32> to vector<1x16x1xf32>
    %cst_53 = arith.constant 6.400000e+01 : f32
    %144 = vector.broadcast %cst_53 : f32 to vector<1x16x1xf32>
    %145 = arith.divf %143, %144 : vector<1x16x1xf32>
    %146 = vector.broadcast %145 : vector<1x16x1xf32> to vector<2x16x32xf32>
    %147 = arith.subf %141, %146 : vector<2x16x32xf32>
    %148 = arith.mulf %147, %147 : vector<2x16x32xf32>
    %cst_54 = arith.constant dense<0.000000e+00> : vector<16xf32>
    %149 = vector.multi_reduction <add>, %148, %cst_54 [0, 2] : vector<2x16x32xf32> to vector<16xf32>
    %150 = vector.shape_cast %149 : vector<16xf32> to vector<1x16x1xf32>
    %cst_55 = arith.constant 6.400000e+01 : f32
    %151 = vector.broadcast %cst_55 : f32 to vector<1x16x1xf32>
    %152 = arith.divf %150, %151 : vector<1x16x1xf32>
    %153 = vector.shape_cast %5 : vector<16x1xf32> to vector<1x16x1xf32>
    %cst_56 = arith.constant 9.99999974E-6 : f32
    %154 = vector.broadcast %cst_56 : f32 to vector<1x16x1xf32>
    %155 = arith.addf %152, %154 : vector<1x16x1xf32>
    %156 = math.rsqrt %155 : vector<1x16x1xf32>
    %157 = arith.mulf %153, %156 : vector<1x16x1xf32>
    %158 = vector.shape_cast %6 : vector<16x1xf32> to vector<1x16x1xf32>
    %159 = arith.mulf %145, %157 : vector<1x16x1xf32>
    %160 = arith.subf %158, %159 : vector<1x16x1xf32>
    %c0_57 = arith.constant 0 : index
    %c0_58 = arith.constant 0 : index
    %161 = vector.load %arg9[%c0_57, %c0_58] : memref<32x32xf32, #tpu.memory_space<vmem>>, vector<32x32xf32>
    %162 = vector.shape_cast %161 : vector<32x32xf32> to vector<2x16x32xf32>
    %163 = vector.broadcast %157 : vector<1x16x1xf32> to vector<2x16x32xf32>
    %164 = arith.mulf %162, %163 : vector<2x16x32xf32>
    %165 = vector.broadcast %160 : vector<1x16x1xf32> to vector<2x16x32xf32>
    %166 = arith.addf %164, %165 : vector<2x16x32xf32>
    %167 = vector.shape_cast %166 : vector<2x16x32xf32> to vector<32x32xf32>
    %168 = arith.truncf %167 : vector<32x32xf32> to vector<32x32xbf16>
    %c0_59 = arith.constant 0 : index
    %c0_60 = arith.constant 0 : index
    %c0_61 = arith.constant 0 : index
    %169 = vector.load %arg4[%c0_59, %c0_60, %c0_61] : memref<1x32x64xbf16, #tpu.memory_space<vmem>>, vector<1x32x64xbf16>
    %170 = vector.shape_cast %169 : vector<1x32x64xbf16> to vector<32x64xbf16>
    %cst_62 = arith.constant dense<0.000000e+00> : vector<32x64xf32>
    %171 = tpu.matmul %168, %170, %cst_62 {dimension_numbers = #tpu.dot_dimension_numbers<[1], [0], [0], [1], [0, 0, 1, 1], [], []>} : vector<32x32xbf16>, vector<32x64xbf16>, vector<32x64xf32> -> vector<32x64xf32>
    %172 = vector.broadcast %10 : vector<1x64xf32> to vector<32x64xf32>
    %173 = arith.addf %171, %172 : vector<32x64xf32>
    %cst_63 = arith.constant 5.000000e-01 : f32
    %174 = vector.broadcast %cst_63 : f32 to vector<32x64xf32>
    %175 = arith.mulf %174, %173 : vector<32x64xf32>
    %cst_64 = arith.constant 0.707106769 : f32
    %176 = vector.broadcast %cst_64 : f32 to vector<32x64xf32>
    %177 = arith.mulf %173, %176 : vector<32x64xf32>
    %178 = math.erf %177 : vector<32x64xf32>
    %cst_65 = arith.constant 1.000000e+00 : f32
    %179 = vector.broadcast %cst_65 : f32 to vector<32x64xf32>
    %180 = arith.addf %179, %178 : vector<32x64xf32>
    %181 = arith.mulf %175, %180 : vector<32x64xf32>
    %182 = arith.truncf %181 : vector<32x64xf32> to vector<32x64xbf16>
    %c0_66 = arith.constant 0 : index
    %c0_67 = arith.constant 0 : index
    %c0_68 = arith.constant 0 : index
    %183 = vector.load %arg5[%c0_66, %c0_67, %c0_68] : memref<1x64x32xbf16, #tpu.memory_space<vmem>>, vector<1x64x32xbf16>
    %184 = vector.shape_cast %183 : vector<1x64x32xbf16> to vector<64x32xbf16>
    %cst_69 = arith.constant dense<0.000000e+00> : vector<32x32xf32>
    %185 = tpu.matmul %182, %184, %cst_69 {dimension_numbers = #tpu.dot_dimension_numbers<[1], [0], [0], [1], [0, 0, 1, 1], [], []>} : vector<32x64xbf16>, vector<64x32xbf16>, vector<32x32xf32> -> vector<32x32xf32>
    %186 = vector.broadcast %12 : vector<1x32xf32> to vector<32x32xf32>
    %187 = arith.addf %185, %186 : vector<32x32xf32>
    %188 = arith.addf %167, %187 : vector<32x32xf32>
    %c0_70 = arith.constant 0 : index
    %c0_71 = arith.constant 0 : index
    %189 = vector.load %arg9[%c0_70, %c0_71] : memref<32x32xf32, #tpu.memory_space<vmem>>, vector<32x32xf32>
    tpu.vector_store %arg9[%c0_70, %c0_71], %188 {strides = array<i32>} : memref<32x32xf32, #tpu.memory_space<vmem>>, vector<32x32xf32>,
    %c0_72 = arith.constant 0 : index
    %c0_73 = arith.constant 0 : index
    %190 = vector.load %arg9[%c0_72, %c0_73] : memref<32x32xf32, #tpu.memory_space<vmem>>, vector<32x32xf32>
    %191 = vector.shape_cast %190 : vector<32x32xf32> to vector<2x16x32xf32>
    %cst_74 = arith.constant dense<0.000000e+00> : vector<16xf32>
    %192 = vector.multi_reduction <add>, %191, %cst_74 [0, 2] : vector<2x16x32xf32> to vector<16xf32>
    %193 = vector.shape_cast %192 : vector<16xf32> to vector<1x16x1xf32>
    %cst_75 = arith.constant 6.400000e+01 : f32
    %194 = vector.broadcast %cst_75 : f32 to vector<1x16x1xf32>
    %195 = arith.divf %193, %194 : vector<1x16x1xf32>
    %196 = vector.broadcast %195 : vector<1x16x1xf32> to vector<2x16x32xf32>
    %197 = arith.subf %191, %196 : vector<2x16x32xf32>
    %198 = arith.mulf %197, %197 : vector<2x16x32xf32>
    %cst_76 = arith.constant dense<0.000000e+00> : vector<16xf32>
    %199 = vector.multi_reduction <add>, %198, %cst_76 [0, 2] : vector<2x16x32xf32> to vector<16xf32>
    %200 = vector.shape_cast %199 : vector<16xf32> to vector<1x16x1xf32>
    %cst_77 = arith.constant 6.400000e+01 : f32
    %201 = vector.broadcast %cst_77 : f32 to vector<1x16x1xf32>
    %202 = arith.divf %200, %201 : vector<1x16x1xf32>
    %203 = vector.broadcast %195 : vector<1x16x1xf32> to vector<2x16x32xf32>
    %204 = arith.subf %191, %203 : vector<2x16x32xf32>
    %205 = vector.shape_cast %7 : vector<16x1xf32> to vector<1x16x1xf32>
    %cst_78 = arith.constant 9.99999974E-6 : f32
    %206 = vector.broadcast %cst_78 : f32 to vector<1x16x1xf32>
    %207 = arith.addf %202, %206 : vector<1x16x1xf32>
    %208 = math.rsqrt %207 : vector<1x16x1xf32>
    %209 = arith.mulf %205, %208 : vector<1x16x1xf32>
    %210 = vector.broadcast %209 : vector<1x16x1xf32> to vector<2x16x32xf32>
    %211 = arith.mulf %204, %210 : vector<2x16x32xf32>
    %212 = vector.shape_cast %8 : vector<16x1xf32> to vector<1x16x1xf32>
    %213 = vector.broadcast %212 : vector<1x16x1xf32> to vector<2x16x32xf32>
    %214 = arith.addf %211, %213 : vector<2x16x32xf32>
    %215 = vector.shape_cast %214 : vector<2x16x32xf32> to vector<32x32xf32>
    %c0_79 = arith.constant 0 : index
    %c0_80 = arith.constant 0 : index
    %216 = vector.load %arg8[%c0_79, %c0_80] : memref<32x32xf32, #tpu.memory_space<vmem>>, vector<32x32xf32>
    tpu.vector_store %arg8[%c0_79, %c0_80], %215 {strides = array<i32>} : memref<32x32xf32, #tpu.memory_space<vmem>>, vector<32x32xf32>,
    return
  }
  func.func @transform_0(%arg0: i32) -> (i32, i32) {
    %c0_i32 = arith.constant 0 : i32
    %c0_i32_0 = arith.constant 0 : i32
    %c0_i32_1 = arith.constant 0 : i32
    return %c0_i32, %c0_i32_0 : i32, i32
  }
  func.func @transform_1(%arg0: i32) -> (i32, i32, i32) {
    %c0_i32 = arith.constant 0 : i32
    %c0_i32_0 = arith.constant 0 : i32
    %c0_i32_1 = arith.constant 0 : i32
    return %arg0, %c0_i32, %c0_i32_0 : i32, i32, i32
  }
  func.func @transform_2(%arg0: i32) -> (i32, i32, i32) {
    %c0_i32 = arith.constant 0 : i32
    %c0_i32_0 = arith.constant 0 : i32
    %c0_i32_1 = arith.constant 0 : i32
    return %arg0, %c0_i32, %c0_i32_0 : i32, i32, i32
  }
  func.func @transform_3(%arg0: i32) -> (i32, i32, i32) {
    %c0_i32 = arith.constant 0 : i32
    %c0_i32_0 = arith.constant 0 : i32
    %c0_i32_1 = arith.constant 0 : i32
    return %arg0, %c0_i32, %c0_i32_0 : i32, i32, i32
  }
  func.func @transform_4(%arg0: i32) -> (i32, i32, i32) {
    %c0_i32 = arith.constant 0 : i32
    %c0_i32_0 = arith.constant 0 : i32
    %c0_i32_1 = arith.constant 0 : i32
    return %arg0, %c0_i32, %c0_i32_0 : i32, i32, i32
  }
  func.func @transform_5(%arg0: i32) -> (i32, i32, i32) {
    %c0_i32 = arith.constant 0 : i32
    %c0_i32_0 = arith.constant 0 : i32
    %c0_i32_1 = arith.constant 0 : i32
    return %arg0, %c0_i32, %c0_i32_0 : i32, i32, i32
  }
  func.func @transform_6(%arg0: i32) -> (i32, i32, i32) {
    %c0_i32 = arith.constant 0 : i32
    %c0_i32_0 = arith.constant 0 : i32
    %c0_i32_1 = arith.constant 0 : i32
    return %arg0, %c0_i32, %c0_i32_0 : i32, i32, i32
  }
  func.func @transform_7(%arg0: i32) -> (i32, i32) {
    %c0_i32 = arith.constant 0 : i32
    %c0_i32_0 = arith.constant 0 : i32
    %c0_i32_1 = arith.constant 0 : i32
    return %c0_i32, %c0_i32_0 : i32, i32
  }
}

</mosaic_0001>

<llo_original>
// kernel: transformer_tsai_forward.1
$region0: #{transformer_tsai_forward.1}
  #allocation0 [shape = 'u32[]', space=smem, size = 0x4, offset = 0x4, fixed_abs, tag = 'smem constant byte address 0x4 - core index']
  #allocation1 [shape = 'u32[144,128]{1,0:T(1,128)}', space=vmem, size = 0x12000, scoped, tag = 'internal scratch']
  #allocation2 [shape = 'f32[32,32]{1,0:T(8,128)}', space=vmem, size = 0x4000, scoped, tag = 'scratch operand']
  %s0 = inlined_call_operand.vmem [shape: f32[32,32], index: 0, kind: input, shape index: {}]
  %s1 = inlined_call_operand.vmem [shape: bf16[2,32,96], index: 1, kind: input, shape index: {}]
  %s2 = inlined_call_operand.vmem [shape: bf16[2,32,32], index: 2, kind: input, shape index: {}]
  %s3 = inlined_call_operand.vmem [shape: bf16[2,32,64], index: 3, kind: input, shape index: {}]
  %s4 = inlined_call_operand.vmem [shape: bf16[2,64,32], index: 4, kind: input, shape index: {}]
  %s5 = inlined_call_operand.vmem [shape: f32[2,16,4], index: 5, kind: input, shape index: {}]
  %s6 = inlined_call_operand.vmem [shape: f32[2,1,96], index: 6, kind: input, shape index: {}]
  %s7 = inlined_call_operand.vmem [shape: f32[32,32], index: 7, kind: output, shape index: {}]
  %s8 = sld [smem:[#allocation0]]
  $region65: #{transformer_tsai_forward.1} parent=0
    _
  %s10 = ssub.s32 1, %s8
  %s11 = scalar_select 0, %s10, %s8
  loop: start=0, step=1, limit=4
  $region2: #{transformer_tsai_forward.1} parent=0 // loop_pre_header
    _
  $region3: #{transformer_tsai_forward.1} parent=0 // loop_header
    %s13 = sphi 0, %s17
    %p14 = scmp.ge.s32.totalorder %s13, 4
    %s21 = sphi 0, %s21
    %s23 = sphi 0, %s21
    %s24 = sphi 0, %s23
    %s38 = sphi 0, %s24
    %s44 = sphi 0, %s46
    %s47 = sphi 0, %s44
    %s48 = sphi 0, %s47
    %s64 = sphi 0, %s48
    %s70 = sphi 0, %s72
    %s73 = sphi 0, %s70
    %s74 = sphi 0, %s73
    %s90 = sphi 0, %s74
    %s96 = sphi 0, %s98
    %s99 = sphi 0, %s96
    %s100 = sphi 0, %s99
    %s116 = sphi 0, %s100
    %s122 = sphi 0, %s124
    %s125 = sphi 0, %s122
    %s126 = sphi 0, %s125
    %s142 = sphi 0, %s126
    %s148 = sphi 0, %s150
    %s151 = sphi 0, %s148
    %s152 = sphi 0, %s151
    %s168 = sphi 0, %s152
    %s174 = sphi 0, %s176
    %s177 = sphi 0, %s174
    %s178 = sphi 0, %s177
    %s194 = sphi 0, %s178
    %s198 = sphi 0, %s198
    %s200 = sphi 0, %s198
    %s201 = sphi 0, %s200
    %s215 = sphi 0, %s201
  $region4: #{transformer_tsai_forward.1} parent=0 // loop_header_branch
    %16 = sbr.rel (%p14) target = $region8
  $region5: #{transformer_tsai_forward.1} parent=0 // loop_body
    %s18 = ssub.s32 %s13, 1
    %s19 = ssub.s32 %s13, 2
    %s20 = sadd.s32 %s13, 1
    %s22 = sadd.s32 %s21, 1
    %p25 = scmp.eq.s32.totalorder %s13, 1
    %p26 = scmp.ne.s32.totalorder %s21, %s23
    %p27 = scmp.eq.s32.totalorder %s13, 0
    %p28 = por %p26, %p27
    %p29 = scmp.ne.s32.totalorder %s21, %s23
    %p30 = scmp.eq.s32.totalorder %s18, 1
    %p31 = por %p29, %p30
    %p32 = scmp.ne.s32.totalorder %s23, %s24
    %p33 = scmp.eq.s32.totalorder %s18, 0
    %p34 = por %p32, %p33
    %p35 = scmp.ne.s32.totalorder %s23, %s24
    %p36 = scmp.eq.s32.totalorder %s19, 1
    %p37 = por %p35, %p36
    %p39 = scmp.ne.s32.totalorder %s24, %s38
    %p40 = scmp.eq.s32.totalorder %s19, 0
    %p41 = por %p39, %p40
    %s42 = ssub.s32 %s13, %s20
    %p43 = scmp.eq.s32.totalorder %s42, 0
    %s45 = sadd.s32 %s44, 1
    %s46 = scalar_select %p43, %s44, %s45
    %p49 = pneg %p43
    %p50 = scmp.eq.s32.totalorder %s13, 1
    %p51 = por %p49, %p50
    %p52 = scmp.ne.s32.totalorder %s44, %s47
    %p53 = scmp.eq.s32.totalorder %s13, 0
    %p54 = por %p52, %p53
    %p55 = scmp.ne.s32.totalorder %s44, %s47
    %p56 = scmp.eq.s32.totalorder %s18, 1
    %p57 = por %p55, %p56
    %p58 = scmp.ne.s32.totalorder %s47, %s48
    %p59 = scmp.eq.s32.totalorder %s18, 0
    %p60 = por %p58, %p59
    %p61 = scmp.ne.s32.totalorder %s47, %s48
    %p62 = scmp.eq.s32.totalorder %s19, 1
    %p63 = por %p61, %p62
    %p65 = scmp.ne.s32.totalorder %s48, %s64
    %p66 = scmp.eq.s32.totalorder %s19, 0
    %p67 = por %p65, %p66
    %s68 = ssub.s32 %s13, %s20
    %p69 = scmp.eq.s32.totalorder %s68, 0
    %s71 = sadd.s32 %s70, 1
    %s72 = scalar_select %p69, %s70, %s71
    %p75 = pneg %p69
    %p76 = scmp.eq.s32.totalorder %s13, 1
    %p77 = por %p75, %p76
    %p78 = scmp.ne.s32.totalorder %s70, %s73
    %p79 = scmp.eq.s32.totalorder %s13, 0
    %p80 = por %p78, %p79
    %p81 = scmp.ne.s32.totalorder %s70, %s73
    %p82 = scmp.eq.s32.totalorder %s18, 1
    %p83 = por %p81, %p82
    %p84 = scmp.ne.s32.totalorder %s73, %s74
    %p85 = scmp.eq.s32.totalorder %s18, 0
    %p86 = por %p84, %p85
    %p87 = scmp.ne.s32.totalorder %s73, %s74
    %p88 = scmp.eq.s32.totalorder %s19, 1
    %p89 = por %p87, %p88
    %p91 = scmp.ne.s32.totalorder %s74, %s90
    %p92 = scmp.eq.s32.totalorder %s19, 0
    %p93 = por %p91, %p92
    %s94 = ssub.s32 %s13, %s20
    %p95 = scmp.eq.s32.totalorder %s94, 0
    %s97 = sadd.s32 %s96, 1
    %s98 = scalar_select %p95, %s96, %s97
    %p101 = pneg %p95
    %p102 = scmp.eq.s32.totalorder %s13, 1
    %p103 = por %p101, %p102
    %p104 = scmp.ne.s32.totalorder %s96, %s99
    %p105 = scmp.eq.s32.totalorder %s13, 0
    %p106 = por %p104, %p105
    %p107 = scmp.ne.s32.totalorder %s96, %s99
    %p108 = scmp.eq.s32.totalorder %s18, 1
    %p109 = por %p107, %p108
    %p110 = scmp.ne.s32.totalorder %s99, %s100
    %p111 = scmp.eq.s32.totalorder %s18, 0
    %p112 = por %p110, %p111
    %p113 = scmp.ne.s32.totalorder %s99, %s100
    %p114 = scmp.eq.s32.totalorder %s19, 1
    %p115 = por %p113, %p114
    %p117 = scmp.ne.s32.totalorder %s100, %s116
    %p118 = scmp.eq.s32.totalorder %s19, 0
    %p119 = por %p117, %p118
    %s120 = ssub.s32 %s13, %s20
    %p121 = scmp.eq.s32.totalorder %s120, 0
    %s123 = sadd.s32 %s122, 1
    %s124 = scalar_select %p121, %s122, %s123
    %p127 = pneg %p121
    %p128 = scmp.eq.s32.totalorder %s13, 1
    %p129 = por %p127, %p128
    %p130 = scmp.ne.s32.totalorder %s122, %s125
    %p131 = scmp.eq.s32.totalorder %s13, 0
    %p132 = por %p130, %p131
    %p133 = scmp.ne.s32.totalorder %s122, %s125
    %p134 = scmp.eq.s32.totalorder %s18, 1
    %p135 = por %p133, %p134
    %p136 = scmp.ne.s32.totalorder %s125, %s126
    %p137 = scmp.eq.s32.totalorder %s18, 0
    %p138 = por %p136, %p137
    %p139 = scmp.ne.s32.totalorder %s125, %s126
    %p140 = scmp.eq.s32.totalorder %s19, 1
    %p141 = por %p139, %p140
    %p143 = scmp.ne.s32.totalorder %s126, %s142
    %p144 = scmp.eq.s32.totalorder %s19, 0
    %p145 = por %p143, %p144
    %s146 = ssub.s32 %s13, %s20
    %p147 = scmp.eq.s32.totalorder %s146, 0
    %s149 = sadd.s32 %s148, 1
    %s150 = scalar_select %p147, %s148, %s149
    %p153 = pneg %p147
    %p154 = scmp.eq.s32.totalorder %s13, 1
    %p155 = por %p153, %p154
    %p156 = scmp.ne.s32.totalorder %s148, %s151
    %p157 = scmp.eq.s32.totalorder %s13, 0
    %p158 = por %p156, %p157
    %p159 = scmp.ne.s32.totalorder %s148, %s151
    %p160 = scmp.eq.s32.totalorder %s18, 1
    %p161 = por %p159, %p160
    %p162 = scmp.ne.s32.totalorder %s151, %s152
    %p163 = scmp.eq.s32.totalorder %s18, 0
    %p164 = por %p162, %p163
    %p165 = scmp.ne.s32.totalorder %s151, %s152
    %p166 = scmp.eq.s32.totalorder %s19, 1
    %p167 = por %p165, %p166
    %p169 = scmp.ne.s32.totalorder %s152, %s168
    %p170 = scmp.eq.s32.totalorder %s19, 0
    %p171 = por %p169, %p170
    %s172 = ssub.s32 %s13, %s20
    %p173 = scmp.eq.s32.totalorder %s172, 0
    %s175 = sadd.s32 %s174, 1
    %s176 = scalar_select %p173, %s174, %s175
    %p179 = pneg %p173
    %p180 = scmp.eq.s32.totalorder %s13, 1
    %p181 = por %p179, %p180
    %p182 = scmp.ne.s32.totalorder %s174, %s177
    %p183 = scmp.eq.s32.totalorder %s13, 0
    %p184 = por %p182, %p183
    %p185 = scmp.ne.s32.totalorder %s174, %s177
    %p186 = scmp.eq.s32.totalorder %s18, 1
    %p187 = por %p185, %p186
    %p188 = scmp.ne.s32.totalorder %s177, %s178
    %p189 = scmp.eq.s32.totalorder %s18, 0
    %p190 = por %p188, %p189
    %p191 = scmp.ne.s32.totalorder %s177, %s178
    %p192 = scmp.eq.s32.totalorder %s19, 1
    %p193 = por %p191, %p192
    %p195 = scmp.ne.s32.totalorder %s178, %s194
    %p196 = scmp.eq.s32.totalorder %s19, 0
    %p197 = por %p195, %p196
    %s199 = sadd.s32 %s198, 1
    %p202 = scmp.eq.s32.totalorder %s13, 1
    %p203 = scmp.ne.s32.totalorder %s198, %s200
    %p204 = scmp.eq.s32.totalorder %s13, 0
    %p205 = por %p203, %p204
    %p206 = scmp.ne.s32.totalorder %s198, %s200
    %p207 = scmp.eq.s32.totalorder %s18, 1
    %p208 = por %p206, %p207
    %p209 = scmp.ne.s32.totalorder %s200, %s201
    %p210 = scmp.eq.s32.totalorder %s18, 0
    %p211 = por %p209, %p210
    %p212 = scmp.ne.s32.totalorder %s200, %s201
    %p213 = scmp.eq.s32.totalorder %s19, 1
    %p214 = por %p212, %p213
    %p216 = scmp.ne.s32.totalorder %s201, %s215
    %p217 = scmp.eq.s32.totalorder %s19, 0
    %p218 = por %p216, %p217
    %p219 = scmp.le.s32.totalorder 1, %s13
    %p220 = scmp.lt.s32.totalorder %s13, 3
    %p221 = pnand %p219, %p220
    %p222 = pneg %p221
    // Predicated region
    $region9: #{transformer_tsai_forward.1} parent=5 // pred_check
      _
    $region10: #{transformer_tsai_forward.1} parent=5 // pred_check_branch
      %224 = sbr.rel (%p221) target = $region12
    $region11: #{transformer_tsai_forward.1} parent=5 // pred_region
      %s225 = ssub.s32 %s13, 1
      // Predicated region
      $region13: #{transformer_tsai_forward.1} parent=11 // pred_check
        %p226 = pneg %p34
      $region14: #{transformer_tsai_forward.1} parent=11 // pred_check_branch
        %228 = sbr.rel (%p226) target = $region16
      $region15: #{transformer_tsai_forward.1} parent=11 // pred_region
        _
      $region16: #{transformer_tsai_forward.1} parent=11 // pred_fallthru
        _
    $region12: #{transformer_tsai_forward.1} parent=5 // pred_fallthru
      _
    %p229 = scmp.lt.s32.totalorder %s13, 2
    // Predicated region
    $region17: #{transformer_tsai_forward.1} parent=5 // pred_check
      %p230 = pneg %p229
    $region18: #{transformer_tsai_forward.1} parent=5 // pred_check_branch
      %232 = sbr.rel (%p230) target = $region20
    $region19: #{transformer_tsai_forward.1} parent=5 // pred_region
      // Predicated region
      $region21: #{transformer_tsai_forward.1} parent=19 // pred_check
        %p233 = pneg %p54
      $region22: #{transformer_tsai_forward.1} parent=19 // pred_check_branch
        %235 = sbr.rel (%p233) target = $region24
      $region23: #{transformer_tsai_forward.1} parent=19 // pred_region
        %p236 = scmp.lt.s32.totalorder %s13, 1
        %s237 = scalar_select %p236, %s13, 1
        %s238 = smul.addr %s237, 4
        %s239 = smul.addr %s238, 4
        %s240 = scalar_lea.vmem %s1, %s239
      $region24: #{transformer_tsai_forward.1} parent=19 // pred_fallthru
        _
      // Predicated region
      $region25: #{transformer_tsai_forward.1} parent=19 // pred_check
        %p241 = pneg %p80
      $region26: #{transformer_tsai_forward.1} parent=19 // pred_check_branch
        %243 = sbr.rel (%p241) target = $region28
      $region27: #{transformer_tsai_forward.1} parent=19 // pred_region
        %p244 = scmp.lt.s32.totalorder %s13, 1
        %s245 = scalar_select %p244, %s13, 1
        %s246 = smul.addr %s245, 4
        %s247 = smul.addr %s246, 4
        %s248 = scalar_lea.vmem %s2, %s247
      $region28: #{transformer_tsai_forward.1} parent=19 // pred_fallthru
        _
      // Predicated region
      $region29: #{transformer_tsai_forward.1} parent=19 // pred_check
        %p249 = pneg %p106
      $region30: #{transformer_tsai_forward.1} parent=19 // pred_check_branch
        %251 = sbr.rel (%p249) target = $region32
      $region31: #{transformer_tsai_forward.1} parent=19 // pred_region
        %p252 = scmp.lt.s32.totalorder %s13, 1
        %s253 = scalar_select %p252, %s13, 1
        %s254 = smul.addr %s253, 4
        %s255 = smul.addr %s254, 4
        %s256 = scalar_lea.vmem %s3, %s255
      $region32: #{transformer_tsai_forward.1} parent=19 // pred_fallthru
        _
      // Predicated region
      $region33: #{transformer_tsai_forward.1} parent=19 // pred_check
        %p257 = pneg %p132
      $region34: #{transformer_tsai_forward.1} parent=19 // pred_check_branch
        %259 = sbr.rel (%p257) target = $region36
      $region35: #{transformer_tsai_forward.1} parent=19 // pred_region
        %p260 = scmp.lt.s32.totalorder %s13, 1
        %s261 = scalar_select %p260, %s13, 1
        %s262 = smul.addr %s261, 8
        %s263 = smul.addr %s262, 4
        %s264 = scalar_lea.vmem %s4, %s263
      $region36: #{transformer_tsai_forward.1} parent=19 // pred_fallthru
        _
      // Predicated region
      $region37: #{transformer_tsai_forward.1} parent=19 // pred_check
        %p265 = pneg %p158
      $region38: #{transformer_tsai_forward.1} parent=19 // pred_check_branch
        %267 = sbr.rel (%p265) target = $region40
      $region39: #{transformer_tsai_forward.1} parent=19 // pred_region
        %p268 = scmp.lt.s32.totalorder %s13, 1
        %s269 = scalar_select %p268, %s13, 1
        %s270 = smul.addr %s269, 2
        %s271 = smul.addr %s270, 8
        %s272 = scalar_lea.vmem %s5, %s271
      $region40: #{transformer_tsai_forward.1} parent=19 // pred_fallthru
        _
      // Predicated region
      $region41: #{transformer_tsai_forward.1} parent=19 // pred_check
        %p273 = pneg %p184
      $region42: #{transformer_tsai_forward.1} parent=19 // pred_check_branch
        %275 = sbr.rel (%p273) target = $region44
      $region43: #{transformer_tsai_forward.1} parent=19 // pred_region
        %p276 = scmp.lt.s32.totalorder %s13, 1
        %s277 = scalar_select %p276, %s13, 1
        %s278 = scalar_lea.vmem %s6, %s277
      $region44: #{transformer_tsai_forward.1} parent=19 // pred_fallthru
        _
    $region20: #{transformer_tsai_forward.1} parent=5 // pred_fallthru
      _
    %p279 = scmp.le.s32.totalorder 1, %s13
    %p280 = scmp.lt.s32.totalorder %s13, 3
    %p281 = pnand %p279, %p280
    %p282 = pneg %p281
    // Predicated region
    $region45: #{transformer_tsai_forward.1} parent=5 // pred_check
      _
    $region46: #{transformer_tsai_forward.1} parent=5 // pred_check_branch
      %284 = sbr.rel (%p281) target = $region48
    $region47: #{transformer_tsai_forward.1} parent=5 // pred_region
      %s285 = ssub.s32 %s13, 1
      %p286 = pneg %p34
      %p287 = pneg %p31
      %p288 = scmp.lt.s32.totalorder %s18, 1
      %s289 = scalar_select %p288, %s18, 1
      %s290 = smul.addr %s289, 4
      %s291 = smul.addr %s290, 4
      %s292 = scalar_lea.vmem %s1, %s291
      %p293 = pneg %p60
      %p294 = pneg %p57
      %p295 = scmp.lt.s32.totalorder %s18, 1
      %s296 = scalar_select %p295, %s18, 1
      %s297 = smul.addr %s296, 4
      %s298 = smul.addr %s297, 4
      %s299 = scalar_lea.vmem %s2, %s298
      %p300 = pneg %p86
      %p301 = pneg %p83
      %p302 = scmp.lt.s32.totalorder %s18, 1
      %s303 = scalar_select %p302, %s18, 1
      %s304 = smul.addr %s303, 4
      %s305 = smul.addr %s304, 4
      %s306 = scalar_lea.vmem %s3, %s305
      %p307 = pneg %p112
      %p308 = pneg %p109
      %p309 = scmp.lt.s32.totalorder %s18, 1
      %s310 = scalar_select %p309, %s18, 1
      %s311 = smul.addr %s310, 8
      %s312 = smul.addr %s311, 4
      %s313 = scalar_lea.vmem %s4, %s312
      %p314 = pneg %p138
      %p315 = pneg %p135
      %p316 = scmp.lt.s32.totalorder %s18, 1
      %s317 = scalar_select %p316, %s18, 1
      %s318 = smul.addr %s317, 2
      %s319 = smul.addr %s318, 8
      %s320 = scalar_lea.vmem %s5, %s319
      %p321 = pneg %p164
      %p322 = pneg %p161
      %p323 = scmp.lt.s32.totalorder %s18, 1
      %s324 = scalar_select %p323, %s18, 1
      %s325 = scalar_lea.vmem %s6, %s324
      %p326 = pneg %p190
      %p327 = pneg %p187
      %p328 = pneg %p211
      %p329 = pneg %p208
      %p330 = scmp.lt.s32.totalorder %s18, 1
      %s331 = scalar_select %p330, %s18, 1
      %s332 = smul.addr %s331, 4
      %s333 = smul.addr %s332, 4
      %s334 = scalar_lea.vmem %s1, %s333
      %p335 = scmp.lt.s32.totalorder %s18, 1
      %s336 = scalar_select %p335, %s18, 1
      %s337 = smul.addr %s336, 4
      %s338 = smul.addr %s337, 4
      %s339 = scalar_lea.vmem %s2, %s338
      %p340 = scmp.lt.s32.totalorder %s18, 1
      %s341 = scalar_select %p340, %s18, 1
      %s342 = smul.addr %s341, 4
      %s343 = smul.addr %s342, 4
      %s344 = scalar_lea.vmem %s3, %s343
      %p345 = scmp.lt.s32.totalorder %s18, 1
      %s346 = scalar_select %p345, %s18, 1
      %s347 = smul.addr %s346, 8
      %s348 = smul.addr %s347, 4
      %s349 = scalar_lea.vmem %s4, %s348
      %p350 = scmp.lt.s32.totalorder %s18, 1
      %s351 = scalar_select %p350, %s18, 1
      %s352 = smul.addr %s351, 2
      %s353 = smul.addr %s352, 8
      %s354 = scalar_lea.vmem %s5, %s353
      %p355 = scmp.lt.s32.totalorder %s18, 1
      %s356 = scalar_select %p355, %s18, 1
      %s357 = scalar_lea.vmem %s6, %s356
      %p359 = scmp.eq.s32.totalorder %s18, 0
      // Predicated region
      $region49: #{transformer_tsai_forward.1} parent=47 // pred_check
        %p360 = pneg %p359
      $region50: #{transformer_tsai_forward.1} parent=47 // pred_check_branch
        %362 = sbr.rel (%p360) target = $region52
      $region51: #{transformer_tsai_forward.1} parent=47 // pred_region
        %v363 = vld [vmem:[%s0] sm:$0xff]
        %v364 = vld [vmem:[%s0 + $0x8] sm:$0xff]
        %v365 = vld [vmem:[%s0 + $0x10] sm:$0xff]
        %v366 = vld [vmem:[%s0 + $0x18] sm:$0xff]
        %vm367 = vcmask 261120
        %368 = vst.msk [vmem:[%s7] sm:$0xff] %vm367, %v363
        %369 = vst.msk [vmem:[%s7 + $0x8] sm:$0xff] %vm367, %v364
        %370 = vst.msk [vmem:[%s7 + $0x10] sm:$0xff] %vm367, %v365
        %371 = vst.msk [vmem:[%s7 + $0x18] sm:$0xff] %vm367, %v366
      $region52: #{transformer_tsai_forward.1} parent=47 // pred_fallthru
        _
      %v372 = vld [vmem:[%s354] sm:$0xff]
      %v373 = vld [vmem:[%s354 + $0x8] sm:$0xff]
      %v374 = vld [vmem:[%s357] sm:$0x1]
      %v375 = vld [vmem:[%s7] sm:$0xff]
      %v376 = vld [vmem:[%s7 + $0x8] sm:$0xff]
      %v377 = vld [vmem:[%s7 + $0x10] sm:$0xff]
      %v378 = vld [vmem:[%s7 + $0x18] sm:$0xff]
      %v379 = vpack.c.bf16 %v376, %v375
      %v380 = vpack.c.bf16 %v378, %v377
      %v381 = vld [vmem:[%s334] sm:$0xf]
      %v382 = vld [vmem:[%s334 + $0x4] sm:$0xf]
      %v383 = vld [vmem:[%s334 + $0x8] sm:$0xf]
      %v384 = vld [vmem:[%s334 + $0xc] sm:$0xf]
      %v389 = vunpack.c.l.b16 %v381
      %v390 = vunpack.c.l.b16 %v382
      %v391 = vunpack.c.l.b16 %v383
      %v392 = vunpack.c.l.b16 %v384
      %v393 = vpack.c.b16 %v390, %v389
      %v394 = vpack.c.b16 %v392, %v391
      %vm397 = vcmask 261120
      %v399 = vsel %vm397, %v379, 0
      %v402 = vsel %vm397, %v380, 0
      %404 = vmatprep.subr.bf16.mxu0 0
      %405 = vmatpush1.bf16.msra.mxu0 0
      %406 = vmatprep.subr.bf16.mxu0 0
      %407 = vmatpush1.bf16.msra.mxu0 0
      %408 = vmatprep.subr.bf16.mxu0 0
      %409 = vmatpush1.bf16.msra.mxu0 0
      %410 = vmatprep.subr.bf16.mxu0 0
      %411 = vmatpush1.bf16.msra.mxu0 0
      %412 = vmatprep.subr.bf16.mxu0 0
      %413 = vmatpush1.bf16.msra.mxu0 0
      %414 = vmatprep.subr.bf16.mxu0 0
      %415 = vmatpush1.bf16.msra.mxu0 0
      %416 = vmatprep.subr.bf16.mxu0 0
      %417 = vmatpush1.bf16.msra.mxu0 %v394
      %418 = vmatprep.subr.bf16.mxu0 0
      %419 = vmatpush1.bf16.msra.mxu0 %v393
      %420 = vmatprep.subr.bf16.mxu0 0
      %421 = vmatpush2.bf16.msra.mxu0 0
      %422 = vmatprep.subr.bf16.mxu0 0
      %423 = vmatpush2.bf16.msra.mxu0 0
      %424 = vmatprep.subr.bf16.mxu0 0
      %425 = vmatpush2.bf16.msra.mxu0 0
      %426 = vmatprep.subr.bf16.mxu0 0
      %427 = vmatpush2.bf16.msra.mxu0 0
      %428 = vmatprep.subr.bf16.mxu0 0
      %429 = vmatpush2.bf16.msra.mxu0 0
      %430 = vmatprep.subr.bf16.mxu0 0
      %431 = vmatpush2.bf16.msra.mxu0 0
      %432 = vmatprep.subr.bf16.mxu0 0
      %433 = vmatpush2.bf16.msra.mxu0 0
      %434 = vmatprep.subr.bf16.mxu0 0
      %435 = vmatpush2.bf16.msra.mxu0 0
      %436 = vmatprep.mubr.bf16.mxu0 0
      %437 = vmatmul.mubr.bf16.gmra.mxu0 %v399
      %v438 = vpop.f32.mrf.mxu0
      %v439 = vadd.f32 0.0, %v438
      %v440 = vpop.f32.mrf.mxu0
      %v441 = vpop.f32.mrf.mxu0
      %v442 = vadd.f32 0.0, %v441
      %v443 = vpop.f32.mrf.mxu0
      %444 = vmatprep.mubr.bf16.mxu0 0
      %445 = vmatmul.mubr.bf16.gmra.mxu0 %v402
      %v446 = vpop.f32.mrf.mxu0
      %v447 = vadd.f32 0.0, %v446
      %v448 = vpop.f32.mrf.mxu0
      %v449 = vpop.f32.mrf.mxu0
      %v450 = vadd.f32 0.0, %v449
      %v451 = vpop.f32.mrf.mxu0
      %452 = vdwg.mxu0
      %v453 = vpack.c.bf16 %v442, %v439
      %v454 = vpack.c.bf16 %v450, %v447
      %456 = vrot.lane.b32.xlu0 %v453, 96
      %v457 = vpop.permute.xlu0 %456
      %vm458 = vcmask 64512
      %v460 = vsel %vm458, %v453, 0
      %v463 = vsel %vm458, %v457, 0
      %465 = vmatprep.subr.bf16.mxu0 0
      %466 = vmatpush1.bf16.xpose.msra.mxu0 0
      %467 = vmatprep.subr.bf16.mxu0 0
      %468 = vmatpush1.bf16.xpose.msra.mxu0 0
      %469 = vmatprep.subr.bf16.mxu0 0
      %470 = vmatpush1.bf16.xpose.msra.mxu0 0
      %471 = vmatprep.subr.bf16.mxu0 0
      %472 = vmatpush1.bf16.xpose.msra.mxu0 0
      %473 = vmatprep.subr.bf16.mxu0 0
      %474 = vmatpush1.bf16.xpose.msra.mxu0 0
      %475 = vmatprep.subr.bf16.mxu0 0
      %476 = vmatpush1.bf16.xpose.msra.mxu0 0
      %477 = vmatprep.subr.bf16.mxu0 0
      %478 = vmatpush1.bf16.xpose.msra.mxu0 0
      %479 = vmatprep.subr.bf16.mxu0 0
      %480 = vmatpush1.bf16.xpose.msra.mxu0 %v463
      %481 = vmatprep.subr.bf16.mxu0 0
      %482 = vmatpush2.bf16.xpose.msra.mxu0 0
      %483 = vmatprep.subr.bf16.mxu0 0
      %484 = vmatpush2.bf16.xpose.msra.mxu0 0
      %485 = vmatprep.subr.bf16.mxu0 0
      %486 = vmatpush2.bf16.xpose.msra.mxu0 0
      %487 = vmatprep.subr.bf16.mxu0 0
      %488 = vmatpush2.bf16.xpose.msra.mxu0 0
      %489 = vmatprep.subr.bf16.mxu0 0
      %490 = vmatpush2.bf16.xpose.msra.mxu0 0
      %491 = vmatprep.subr.bf16.mxu0 0
      %492 = vmatpush2.bf16.xpose.msra.mxu0 0
      %493 = vmatprep.subr.bf16.mxu0 0
      %494 = vmatpush2.bf16.xpose.msra.mxu0 0
      %495 = vmatprep.subr.bf16.mxu0 0
      %496 = vmatpush2.bf16.xpose.msra.mxu0 0
      %497 = vmatprep.mubr.bf16.mxu0 0
      %498 = vmatmul.mubr.bf16.gmra.mxu0 %v460
      %v499 = vpop.f32.mrf.mxu0
      %v500 = vadd.f32 0.0, %v499
      %v501 = vpop.f32.mrf.mxu0
      %v502 = vpop.f32.mrf.mxu0
      %v503 = vadd.f32 0.0, %v502
      %v504 = vpop.f32.mrf.mxu0
      %505 = vdwg.mxu0
      %507 = vrot.lane.b32.xlu0 %v454, 96
      %v508 = vpop.permute.xlu0 %507
      %v510 = vsel %vm458, %v454, 0
      %v513 = vsel %vm458, %v508, 0
      %515 = vmatprep.subr.bf16.mxu0 0
      %516 = vmatpush1.bf16.xpose.msra.mxu0 0
      %517 = vmatprep.subr.bf16.mxu0 0
      %518 = vmatpush1.bf16.xpose.msra.mxu0 0
      %519 = vmatprep.subr.bf16.mxu0 0
      %520 = vmatpush1.bf16.xpose.msra.mxu0 0
      %521 = vmatprep.subr.bf16.mxu0 0
      %522 = vmatpush1.bf16.xpose.msra.mxu0 0
      %523 = vmatprep.subr.bf16.mxu0 0
      %524 = vmatpush1.bf16.xpose.msra.mxu0 0
      %525 = vmatprep.subr.bf16.mxu0 0
      %526 = vmatpush1.bf16.xpose.msra.mxu0 0
      %527 = vmatprep.subr.bf16.mxu0 0
      %528 = vmatpush1.bf16.xpose.msra.mxu0 0
      %529 = vmatprep.subr.bf16.mxu0 0
      %530 = vmatpush1.bf16.xpose.msra.mxu0 %v513
      %531 = vmatprep.subr.bf16.mxu0 0
      %532 = vmatpush2.bf16.xpose.msra.mxu0 0
      %533 = vmatprep.subr.bf16.mxu0 0
      %534 = vmatpush2.bf16.xpose.msra.mxu0 0
      %535 = vmatprep.subr.bf16.mxu0 0
      %536 = vmatpush2.bf16.xpose.msra.mxu0 0
      %537 = vmatprep.subr.bf16.mxu0 0
      %538 = vmatpush2.bf16.xpose.msra.mxu0 0
      %539 = vmatprep.subr.bf16.mxu0 0
      %540 = vmatpush2.bf16.xpose.msra.mxu0 0
      %541 = vmatprep.subr.bf16.mxu0 0
      %542 = vmatpush2.bf16.xpose.msra.mxu0 0
      %543 = vmatprep.subr.bf16.mxu0 0
      %544 = vmatpush2.bf16.xpose.msra.mxu0 0
      %545 = vmatprep.subr.bf16.mxu0 0
      %546 = vmatpush2.bf16.xpose.msra.mxu0 0
      %547 = vmatprep.mubr.bf16.mxu0 0
      %548 = vmatmul.mubr.bf16.gmra.mxu0 %v510
      %v549 = vpop.f32.mrf.mxu0
      %v550 = vadd.f32 0.0, %v549
      %v551 = vpop.f32.mrf.mxu0
      %v552 = vpop.f32.mrf.mxu0
      %v553 = vadd.f32 0.0, %v552
      %v554 = vpop.f32.mrf.mxu0
      %555 = vdwg.mxu0
      %v556 = vmul.f32 %v500, 0.35355338
      %v557 = vmul.f32 %v503, 0.35355338
      %v558 = vmul.f32 %v550, 0.35355338
      %v559 = vmul.f32 %v553, 0.35355338
      %vm560 = vcmask 130048
      %v561 = vsel %vm560, %v556, -inf
      %562 = vmax.xlane.f32.xlu0 %v561
      %v563 = vpop.xlane.xlu0 %562
      %v564 = vsel %vm560, %v557, -inf
      %565 = vmax.xlane.f32.xlu0 %v564
      %v566 = vpop.xlane.xlu0 %565
      %v567 = vsel %vm560, %v558, -inf
      %568 = vmax.xlane.f32.xlu0 %v567
      %v569 = vpop.xlane.xlu0 %568
      %v570 = vsel %vm560, %v559, -inf
      %571 = vmax.xlane.f32.xlu0 %v570
      %v572 = vpop.xlane.xlu0 %571
      %v573 = vsub.f32 %v556, %v563
      %v574 = vsub.f32 %v557, %v566
      %v575 = vsub.f32 %v558, %v569
      %v576 = vsub.f32 %v559, %v572
      %v577 = vmul.f32 %v573, 1.442695
      %v578 = vpow.pop %v577
      %v579 = vmul.f32 %v574, 1.442695
      %v580 = vpow.pop %v579
      %v581 = vmul.f32 %v575, 1.442695
      %v582 = vpow.pop %v581
      %v583 = vmul.f32 %v576, 1.442695
      %v584 = vpow.pop %v583
      %v585 = vsel %vm560, %v578, 0.0
      %586 = vadd.xlane.f32.xlu0 %v585
      %v587 = vpop.xlane.xlu0 %586
      %v588 = vsel %vm560, %v580, 0.0
      %589 = vadd.xlane.f32.xlu0 %v588
      %v590 = vpop.xlane.xlu0 %589
      %v591 = vsel %vm560, %v582, 0.0
      %592 = vadd.xlane.f32.xlu0 %v591
      %v593 = vpop.xlane.xlu0 %592
      %v594 = vsel %vm560, %v584, 0.0
      %595 = vadd.xlane.f32.xlu0 %v594
      %v596 = vpop.xlane.xlu0 %595
      %v597 = vpack.c.bf16 %v580, %v578
      %v598 = vpack.c.bf16 %v584, %v582
      %599 = vrot.lane.b32.xlu0 %v453, 64
      %v600 = vpop.permute.xlu0 %599
      %v603 = vsel %vm560, %v597, 0
      %605 = vmatprep.subr.bf16.mxu0 0
      %606 = vmatpush1.bf16.msra.mxu0 0
      %607 = vmatprep.subr.bf16.mxu0 0
      %608 = vmatpush1.bf16.msra.mxu0 0
      %609 = vmatprep.subr.bf16.mxu0 0
      %610 = vmatpush1.bf16.msra.mxu0 0
      %611 = vmatprep.subr.bf16.mxu0 0
      %612 = vmatpush1.bf16.msra.mxu0 0
      %613 = vmatprep.subr.bf16.mxu0 0
      %614 = vmatpush1.bf16.msra.mxu0 0
      %615 = vmatprep.subr.bf16.mxu0 0
      %616 = vmatpush1.bf16.msra.mxu0 0
      %617 = vmatprep.subr.bf16.mxu0 0
      %618 = vmatpush1.bf16.msra.mxu0 0
      %619 = vmatprep.subr.bf16.mxu0 0
      %620 = vmatpush1.bf16.msra.mxu0 %v600
      %621 = vmatprep.subr.bf16.mxu0 0
      %622 = vmatpush2.bf16.msra.mxu0 0
      %623 = vmatprep.subr.bf16.mxu0 0
      %624 = vmatpush2.bf16.msra.mxu0 0
      %625 = vmatprep.subr.bf16.mxu0 0
      %626 = vmatpush2.bf16.msra.mxu0 0
      %627 = vmatprep.subr.bf16.mxu0 0
      %628 = vmatpush2.bf16.msra.mxu0 0
      %629 = vmatprep.subr.bf16.mxu0 0
      %630 = vmatpush2.bf16.msra.mxu0 0
      %631 = vmatprep.subr.bf16.mxu0 0
      %632 = vmatpush2.bf16.msra.mxu0 0
      %633 = vmatprep.subr.bf16.mxu0 0
      %634 = vmatpush2.bf16.msra.mxu0 0
      %635 = vmatprep.subr.bf16.mxu0 0
      %636 = vmatpush2.bf16.msra.mxu0 0
      %637 = vmatprep.mubr.bf16.mxu0 0
      %638 = vmatmul.mubr.bf16.gmra.mxu0 %v603
      %v639 = vpop.f32.mrf.mxu0
      %v640 = vadd.f32 0.0, %v639
      %v641 = vpop.f32.mrf.mxu0
      %v642 = vpop.f32.mrf.mxu0
      %v643 = vadd.f32 0.0, %v642
      %v644 = vpop.f32.mrf.mxu0
      %645 = vdwg.mxu0
      %646 = vrot.lane.b32.xlu0 %v454, 64
      %v647 = vpop.permute.xlu0 %646
      %v650 = vsel %vm560, %v598, 0
      %652 = vmatprep.subr.bf16.mxu0 0
      %653 = vmatpush1.bf16.msra.mxu0 0
      %654 = vmatprep.subr.bf16.mxu0 0
      %655 = vmatpush1.bf16.msra.mxu0 0
      %656 = vmatprep.subr.bf16.mxu0 0
      %657 = vmatpush1.bf16.msra.mxu0 0
      %658 = vmatprep.subr.bf16.mxu0 0
      %659 = vmatpush1.bf16.msra.mxu0 0
      %660 = vmatprep.subr.bf16.mxu0 0
      %661 = vmatpush1.bf16.msra.mxu0 0
      %662 = vmatprep.subr.bf16.mxu0 0
      %663 = vmatpush1.bf16.msra.mxu0 0
      %664 = vmatprep.subr.bf16.mxu0 0
      %665 = vmatpush1.bf16.msra.mxu0 0
      %666 = vmatprep.subr.bf16.mxu0 0
      %667 = vmatpush1.bf16.msra.mxu0 %v647
      %668 = vmatprep.subr.bf16.mxu0 0
      %669 = vmatpush2.bf16.msra.mxu0 0
      %670 = vmatprep.subr.bf16.mxu0 0
      %671 = vmatpush2.bf16.msra.mxu0 0
      %672 = vmatprep.subr.bf16.mxu0 0
      %673 = vmatpush2.bf16.msra.mxu0 0
      %674 = vmatprep.subr.bf16.mxu0 0
      %675 = vmatpush2.bf16.msra.mxu0 0
      %676 = vmatprep.subr.bf16.mxu0 0
      %677 = vmatpush2.bf16.msra.mxu0 0
      %678 = vmatprep.subr.bf16.mxu0 0
      %679 = vmatpush2.bf16.msra.mxu0 0
      %680 = vmatprep.subr.bf16.mxu0 0
      %681 = vmatpush2.bf16.msra.mxu0 0
      %682 = vmatprep.subr.bf16.mxu0 0
      %683 = vmatpush2.bf16.msra.mxu0 0
      %684 = vmatprep.mubr.bf16.mxu0 0
      %685 = vmatmul.mubr.bf16.gmra.mxu0 %v650
      %v686 = vpop.f32.mrf.mxu0
      %v687 = vadd.f32 0.0, %v686
      %v688 = vpop.f32.mrf.mxu0
      %v689 = vpop.f32.mrf.mxu0
      %v690 = vadd.f32 0.0, %v689
      %v691 = vpop.f32.mrf.mxu0
      %692 = vdwg.mxu0
      %v693 = vrcp.pop %v587
      %v694 = vrcp.pop %v590
      %v695 = vrcp.pop %v593
      %v696 = vrcp.pop %v596
      %v697 = vmul.f32 %v640, %v693
      %v698 = vmul.f32 %v643, %v694
      %v699 = vmul.f32 %v687, %v695
      %v700 = vmul.f32 %v690, %v696
      %v701 = vpack.c.bf16 %v698, %v697
      %v702 = vpack.c.bf16 %v700, %v699
      %v703 = vld [vmem:[%s339] sm:$0xf]
      %704 = vrot.lane.b32.xlu0 %v453, 120
      %v705 = vpop.permute.xlu0 %704
      %706 = vrot.lane.b32.xlu0 %v453, 88
      %v707 = vpop.permute.xlu0 %706
      %v709 = vsel %vm458, %v705, 0
      %v712 = vsel %vm458, %v707, 0
      %714 = vmatprep.subr.bf16.mxu0 0
      %715 = vmatpush1.bf16.xpose.msra.mxu0 0
      %716 = vmatprep.subr.bf16.mxu0 0
      %717 = vmatpush1.bf16.xpose.msra.mxu0 0
      %718 = vmatprep.subr.bf16.mxu0 0
      %719 = vmatpush1.bf16.xpose.msra.mxu0 0
      %720 = vmatprep.subr.bf16.mxu0 0
      %721 = vmatpush1.bf16.xpose.msra.mxu0 0
      %722 = vmatprep.subr.bf16.mxu0 0
      %723 = vmatpush1.bf16.xpose.msra.mxu0 0
      %724 = vmatprep.subr.bf16.mxu0 0
      %725 = vmatpush1.bf16.xpose.msra.mxu0 0
      %726 = vmatprep.subr.bf16.mxu0 0
      %727 = vmatpush1.bf16.xpose.msra.mxu0 0
      %728 = vmatprep.subr.bf16.mxu0 0
      %729 = vmatpush1.bf16.xpose.msra.mxu0 %v712
      %730 = vmatprep.subr.bf16.mxu0 0
      %731 = vmatpush2.bf16.xpose.msra.mxu0 0
      %732 = vmatprep.subr.bf16.mxu0 0
      %733 = vmatpush2.bf16.xpose.msra.mxu0 0
      %734 = vmatprep.subr.bf16.mxu0 0
      %735 = vmatpush2.bf16.xpose.msra.mxu0 0
      %736 = vmatprep.subr.bf16.mxu0 0
      %737 = vmatpush2.bf16.xpose.msra.mxu0 0
      %738 = vmatprep.subr.bf16.mxu0 0
      %739 = vmatpush2.bf16.xpose.msra.mxu0 0
      %740 = vmatprep.subr.bf16.mxu0 0
      %741 = vmatpush2.bf16.xpose.msra.mxu0 0
      %742 = vmatprep.subr.bf16.mxu0 0
      %743 = vmatpush2.bf16.xpose.msra.mxu0 0
      %744 = vmatprep.subr.bf16.mxu0 0
      %745 = vmatpush2.bf16.xpose.msra.mxu0 0
      %746 = vmatprep.mubr.bf16.mxu0 0
      %747 = vmatmul.mubr.bf16.gmra.mxu0 %v709
      %v748 = vpop.f32.mrf.mxu0
      %v749 = vadd.f32 0.0, %v748
      %v750 = vpop.f32.mrf.mxu0
      %v751 = vpop.f32.mrf.mxu0
      %v752 = vadd.f32 0.0, %v751
      %v753 = vpop.f32.mrf.mxu0
      %754 = vdwg.mxu0
      %755 = vrot.lane.b32.xlu0 %v454, 120
      %v756 = vpop.permute.xlu0 %755
      %757 = vrot.lane.b32.xlu0 %v454, 88
      %v758 = vpop.permute.xlu0 %757
      %v760 = vsel %vm458, %v756, 0
      %v763 = vsel %vm458, %v758, 0
      %765 = vmatprep.subr.bf16.mxu0 0
      %766 = vmatpush1.bf16.xpose.msra.mxu0 0
      %767 = vmatprep.subr.bf16.mxu0 0
      %768 = vmatpush1.bf16.xpose.msra.mxu0 0
      %769 = vmatprep.subr.bf16.mxu0 0
      %770 = vmatpush1.bf16.xpose.msra.mxu0 0
      %771 = vmatprep.subr.bf16.mxu0 0
      %772 = vmatpush1.bf16.xpose.msra.mxu0 0
      %773 = vmatprep.subr.bf16.mxu0 0
      %774 = vmatpush1.bf16.xpose.msra.mxu0 0
      %775 = vmatprep.subr.bf16.mxu0 0
      %776 = vmatpush1.bf16.xpose.msra.mxu0 0
      %777 = vmatprep.subr.bf16.mxu0 0
      %778 = vmatpush1.bf16.xpose.msra.mxu0 0
      %779 = vmatprep.subr.bf16.mxu0 0
      %780 = vmatpush1.bf16.xpose.msra.mxu0 %v763
      %781 = vmatprep.subr.bf16.mxu0 0
      %782 = vmatpush2.bf16.xpose.msra.mxu0 0
      %783 = vmatprep.subr.bf16.mxu0 0
      %784 = vmatpush2.bf16.xpose.msra.mxu0 0
      %785 = vmatprep.subr.bf16.mxu0 0
      %786 = vmatpush2.bf16.xpose.msra.mxu0 0
      %787 = vmatprep.subr.bf16.mxu0 0
      %788 = vmatpush2.bf16.xpose.msra.mxu0 0
      %789 = vmatprep.subr.bf16.mxu0 0
      %790 = vmatpush2.bf16.xpose.msra.mxu0 0
      %791 = vmatprep.subr.bf16.mxu0 0
      %792 = vmatpush2.bf16.xpose.msra.mxu0 0
      %793 = vmatprep.subr.bf16.mxu0 0
      %794 = vmatpush2.bf16.xpose.msra.mxu0 0
      %795 = vmatprep.subr.bf16.mxu0 0
      %796 = vmatpush2.bf16.xpose.msra.mxu0 0
      %797 = vmatprep.mubr.bf16.mxu0 0
      %798 = vmatmul.mubr.bf16.gmra.mxu0 %v760
      %v799 = vpop.f32.mrf.mxu0
      %v800 = vadd.f32 0.0, %v799
      %v801 = vpop.f32.mrf.mxu0
      %v802 = vpop.f32.mrf.mxu0
      %v803 = vadd.f32 0.0, %v802
      %v804 = vpop.f32.mrf.mxu0
      %805 = vdwg.mxu0
      %v806 = vmul.f32 %v749, 0.35355338
      %v807 = vmul.f32 %v752, 0.35355338
      %v808 = vmul.f32 %v800, 0.35355338
      %v809 = vmul.f32 %v803, 0.35355338
      %v810 = vsel %vm560, %v806, -inf
      %811 = vmax.xlane.f32.xlu0 %v810
      %v812 = vpop.xlane.xlu0 %811
      %v813 = vsel %vm560, %v807, -inf
      %814 = vmax.xlane.f32.xlu0 %v813
      %v815 = vpop.xlane.xlu0 %814
      %v816 = vsel %vm560, %v808, -inf
      %817 = vmax.xlane.f32.xlu0 %v816
      %v818 = vpop.xlane.xlu0 %817
      %v819 = vsel %vm560, %v809, -inf
      %820 = vmax.xlane.f32.xlu0 %v819
      %v821 = vpop.xlane.xlu0 %820
      %v822 = vsub.f32 %v806, %v812
      %v823 = vsub.f32 %v807, %v815
      %v824 = vsub.f32 %v808, %v818
      %v825 = vsub.f32 %v809, %v821
      %v826 = vmul.f32 %v822, 1.442695
      %v827 = vpow.pop %v826
      %v828 = vmul.f32 %v823, 1.442695
      %v829 = vpow.pop %v828
      %v830 = vmul.f32 %v824, 1.442695
      %v831 = vpow.pop %v830
      %v832 = vmul.f32 %v825, 1.442695
      %v833 = vpow.pop %v832
      %v834 = vsel %vm560, %v827, 0.0
      %835 = vadd.xlane.f32.xlu0 %v834
      %v836 = vpop.xlane.xlu0 %835
      %v837 = vsel %vm560, %v829, 0.0
      %838 = vadd.xlane.f32.xlu0 %v837
      %v839 = vpop.xlane.xlu0 %838
      %v840 = vsel %vm560, %v831, 0.0
      %841 = vadd.xlane.f32.xlu0 %v840
      %v842 = vpop.xlane.xlu0 %841
      %v843 = vsel %vm560, %v833, 0.0
      %844 = vadd.xlane.f32.xlu0 %v843
      %v845 = vpop.xlane.xlu0 %844
      %v846 = vpack.c.bf16 %v829, %v827
      %v847 = vpack.c.bf16 %v833, %v831
      %848 = vrot.lane.b32.xlu0 %v453, 56
      %v849 = vpop.permute.xlu0 %848
      %v852 = vsel %vm560, %v846, 0
      %854 = vmatprep.subr.bf16.mxu0 0
      %855 = vmatpush1.bf16.msra.mxu0 0
      %856 = vmatprep.subr.bf16.mxu0 0
      %857 = vmatpush1.bf16.msra.mxu0 0
      %858 = vmatprep.subr.bf16.mxu0 0
      %859 = vmatpush1.bf16.msra.mxu0 0
      %860 = vmatprep.subr.bf16.mxu0 0
      %861 = vmatpush1.bf16.msra.mxu0 0
      %862 = vmatprep.subr.bf16.mxu0 0
      %863 = vmatpush1.bf16.msra.mxu0 0
      %864 = vmatprep.subr.bf16.mxu0 0
      %865 = vmatpush1.bf16.msra.mxu0 0
      %866 = vmatprep.subr.bf16.mxu0 0
      %867 = vmatpush1.bf16.msra.mxu0 0
      %868 = vmatprep.subr.bf16.mxu0 0
      %869 = vmatpush1.bf16.msra.mxu0 %v849
      %870 = vmatprep.subr.bf16.mxu0 0
      %871 = vmatpush2.bf16.msra.mxu0 0
      %872 = vmatprep.subr.bf16.mxu0 0
      %873 = vmatpush2.bf16.msra.mxu0 0
      %874 = vmatprep.subr.bf16.mxu0 0
      %875 = vmatpush2.bf16.msra.mxu0 0
      %876 = vmatprep.subr.bf16.mxu0 0
      %877 = vmatpush2.bf16.msra.mxu0 0
      %878 = vmatprep.subr.bf16.mxu0 0
      %879 = vmatpush2.bf16.msra.mxu0 0
      %880 = vmatprep.subr.bf16.mxu0 0
      %881 = vmatpush2.bf16.msra.mxu0 0
      %882 = vmatprep.subr.bf16.mxu0 0
      %883 = vmatpush2.bf16.msra.mxu0 0
      %884 = vmatprep.subr.bf16.mxu0 0
      %885 = vmatpush2.bf16.msra.mxu0 0
      %886 = vmatprep.mubr.bf16.mxu0 0
      %887 = vmatmul.mubr.bf16.gmra.mxu0 %v852
      %v888 = vpop.f32.mrf.mxu0
      %v889 = vadd.f32 0.0, %v888
      %v890 = vpop.f32.mrf.mxu0
      %v891 = vpop.f32.mrf.mxu0
      %v892 = vadd.f32 0.0, %v891
      %v893 = vpop.f32.mrf.mxu0
      %894 = vdwg.mxu0
      %895 = vrot.lane.b32.xlu0 %v454, 56
      %v896 = vpop.permute.xlu0 %895
      %v899 = vsel %vm560, %v847, 0
      %901 = vmatprep.subr.bf16.mxu0 0
      %902 = vmatpush1.bf16.msra.mxu0 0
      %903 = vmatprep.subr.bf16.mxu0 0
      %904 = vmatpush1.bf16.msra.mxu0 0
      %905 = vmatprep.subr.bf16.mxu0 0
      %906 = vmatpush1.bf16.msra.mxu0 0
      %907 = vmatprep.subr.bf16.mxu0 0
      %908 = vmatpush1.bf16.msra.mxu0 0
      %909 = vmatprep.subr.bf16.mxu0 0
      %910 = vmatpush1.bf16.msra.mxu0 0
      %911 = vmatprep.subr.bf16.mxu0 0
      %912 = vmatpush1.bf16.msra.mxu0 0
      %913 = vmatprep.subr.bf16.mxu0 0
      %914 = vmatpush1.bf16.msra.mxu0 0
      %915 = vmatprep.subr.bf16.mxu0 0
      %916 = vmatpush1.bf16.msra.mxu0 %v896
      %917 = vmatprep.subr.bf16.mxu0 0
      %918 = vmatpush2.bf16.msra.mxu0 0
      %919 = vmatprep.subr.bf16.mxu0 0
      %920 = vmatpush2.bf16.msra.mxu0 0
      %921 = vmatprep.subr.bf16.mxu0 0
      %922 = vmatpush2.bf16.msra.mxu0 0
      %923 = vmatprep.subr.bf16.mxu0 0
      %924 = vmatpush2.bf16.msra.mxu0 0
      %925 = vmatprep.subr.bf16.mxu0 0
      %926 = vmatpush2.bf16.msra.mxu0 0
      %927 = vmatprep.subr.bf16.mxu0 0
      %928 = vmatpush2.bf16.msra.mxu0 0
      %929 = vmatprep.subr.bf16.mxu0 0
      %930 = vmatpush2.bf16.msra.mxu0 0
      %931 = vmatprep.subr.bf16.mxu0 0
      %932 = vmatpush2.bf16.msra.mxu0 0
      %933 = vmatprep.mubr.bf16.mxu0 0
      %934 = vmatmul.mubr.bf16.gmra.mxu0 %v899
      %v935 = vpop.f32.mrf.mxu0
      %v936 = vadd.f32 0.0, %v935
      %v937 = vpop.f32.mrf.mxu0
      %v938 = vpop.f32.mrf.mxu0
      %v939 = vadd.f32 0.0, %v938
      %v940 = vpop.f32.mrf.mxu0
      %941 = vdwg.mxu0
      %v942 = vrcp.pop %v836
      %v943 = vrcp.pop %v839
      %v944 = vrcp.pop %v842
      %v945 = vrcp.pop %v845
      %v946 = vmul.f32 %v889, %v942
      %v947 = vmul.f32 %v892, %v943
      %v948 = vmul.f32 %v936, %v944
      %v949 = vmul.f32 %v939, %v945
      %v950 = vpack.c.bf16 %v947, %v946
      %v951 = vpack.c.bf16 %v949, %v948
      %v952 = vld [vmem:[%s339 + $0x4] sm:$0xf]
      %v954 = vsel %vm458, %v950, 0
      %v957 = vsel %vm458, %v951, 0
      %vm959 = vcmask 1043456
      %v961 = vsel %vm959, %v952, 0
      %963 = vmatprep.subr.bf16.mxu0 0
      %964 = vmatpush1.bf16.msra.mxu0 0
      %965 = vmatprep.subr.bf16.mxu0 0
      %966 = vmatpush1.bf16.msra.mxu0 0
      %967 = vmatprep.subr.bf16.mxu0 0
      %968 = vmatpush1.bf16.msra.mxu0 0
      %969 = vmatprep.subr.bf16.mxu0 0
      %970 = vmatpush1.bf16.msra.mxu0 0
      %971 = vmatprep.subr.bf16.mxu0 0
      %972 = vmatpush1.bf16.msra.mxu0 0
      %973 = vmatprep.subr.bf16.mxu0 0
      %974 = vmatpush1.bf16.msra.mxu0 0
      %975 = vmatprep.subr.bf16.mxu0 0
      %976 = vmatpush1.bf16.msra.mxu0 0
      %977 = vmatprep.subr.bf16.mxu0 0
      %978 = vmatpush1.bf16.msra.mxu0 %v961
      %979 = vmatprep.subr.bf16.mxu0 0
      %980 = vmatpush2.bf16.msra.mxu0 0
      %981 = vmatprep.subr.bf16.mxu0 0
      %982 = vmatpush2.bf16.msra.mxu0 0
      %983 = vmatprep.subr.bf16.mxu0 0
      %984 = vmatpush2.bf16.msra.mxu0 0
      %985 = vmatprep.subr.bf16.mxu0 0
      %986 = vmatpush2.bf16.msra.mxu0 0
      %987 = vmatprep.subr.bf16.mxu0 0
      %988 = vmatpush2.bf16.msra.mxu0 0
      %989 = vmatprep.subr.bf16.mxu0 0
      %990 = vmatpush2.bf16.msra.mxu0 0
      %991 = vmatprep.subr.bf16.mxu0 0
      %992 = vmatpush2.bf16.msra.mxu0 0
      %993 = vmatprep.subr.bf16.mxu0 0
      %994 = vmatpush2.bf16.msra.mxu0 0
      %995 = vmatprep.mubr.bf16.mxu0 0
      %996 = vmatmul.mubr.bf16.gmra.mxu0 %v954
      %v997 = vpop.f32.mrf.mxu0
      %v998 = vadd.f32 0.0, %v997
      %v999 = vpop.f32.mrf.mxu0
      %v1000 = vpop.f32.mrf.mxu0
      %v1001 = vadd.f32 0.0, %v1000
      %v1002 = vpop.f32.mrf.mxu0
      %1003 = vmatprep.mubr.bf16.mxu0 0
      %1004 = vmatmul.mubr.bf16.gmra.mxu0 %v957
      %v1005 = vpop.f32.mrf.mxu0
      %v1006 = vadd.f32 0.0, %v1005
      %v1007 = vpop.f32.mrf.mxu0
      %v1008 = vpop.f32.mrf.mxu0
      %v1009 = vadd.f32 0.0, %v1008
      %v1010 = vpop.f32.mrf.mxu0
      %1011 = vdwg.mxu0
      %v1013 = vsel %vm458, %v701, 0
      %v1016 = vsel %vm458, %v702, 0
      %v1019 = vsel %vm959, %v703, 0
      %1021 = vmatprep.subr.bf16.mxu0 0
      %1022 = vmatpush1.bf16.msra.mxu0 0
      %1023 = vmatprep.subr.bf16.mxu0 0
      %1024 = vmatpush1.bf16.msra.mxu0 0
      %1025 = vmatprep.subr.bf16.mxu0 0
      %1026 = vmatpush1.bf16.msra.mxu0 0
      %1027 = vmatprep.subr.bf16.mxu0 0
      %1028 = vmatpush1.bf16.msra.mxu0 0
      %1029 = vmatprep.subr.bf16.mxu0 0
      %1030 = vmatpush1.bf16.msra.mxu0 0
      %1031 = vmatprep.subr.bf16.mxu0 0
      %1032 = vmatpush1.bf16.msra.mxu0 0
      %1033 = vmatprep.subr.bf16.mxu0 0
      %1034 = vmatpush1.bf16.msra.mxu0 0
      %1035 = vmatprep.subr.bf16.mxu0 0
      %1036 = vmatpush1.bf16.msra.mxu0 %v1019
      %1037 = vmatprep.subr.bf16.mxu0 0
      %1038 = vmatpush2.bf16.msra.mxu0 0
      %1039 = vmatprep.subr.bf16.mxu0 0
      %1040 = vmatpush2.bf16.msra.mxu0 0
      %1041 = vmatprep.subr.bf16.mxu0 0
      %1042 = vmatpush2.bf16.msra.mxu0 0
      %1043 = vmatprep.subr.bf16.mxu0 0
      %1044 = vmatpush2.bf16.msra.mxu0 0
      %1045 = vmatprep.subr.bf16.mxu0 0
      %1046 = vmatpush2.bf16.msra.mxu0 0
      %1047 = vmatprep.subr.bf16.mxu0 0
      %1048 = vmatpush2.bf16.msra.mxu0 0
      %1049 = vmatprep.subr.bf16.mxu0 0
      %1050 = vmatpush2.bf16.msra.mxu0 0
      %1051 = vmatprep.subr.bf16.mxu0 0
      %1052 = vmatpush2.bf16.msra.mxu0 0
      %1053 = vmatprep.mubr.bf16.mxu0 0
      %1054 = vmatmul.mubr.bf16.gmra.mxu0 %v1013
      %v1055 = vpop.f32.mrf.mxu0
      %v1056 = vadd.f32 %v998, %v1055
      %v1057 = vpop.f32.mrf.mxu0
      %v1058 = vpop.f32.mrf.mxu0
      %v1059 = vadd.f32 %v1001, %v1058
      %v1060 = vpop.f32.mrf.mxu0
      %1061 = vmatprep.mubr.bf16.mxu0 0
      %1062 = vmatmul.mubr.bf16.gmra.mxu0 %v1016
      %v1063 = vpop.f32.mrf.mxu0
      %v1064 = vadd.f32 %v1006, %v1063
      %v1065 = vpop.f32.mrf.mxu0
      %v1066 = vpop.f32.mrf.mxu0
      %v1067 = vadd.f32 %v1009, %v1066
      %v1068 = vpop.f32.mrf.mxu0
      %1069 = vdwg.mxu0
      %1070 = vrot.lane.b32.xlu0 %v453, 112
      %v1071 = vpop.permute.xlu0 %1070
      %1072 = vrot.lane.b32.xlu0 %v453, 80
      %v1073 = vpop.permute.xlu0 %1072
      %v1075 = vsel %vm458, %v1071, 0
      %v1078 = vsel %vm458, %v1073, 0
      %1080 = vmatprep.subr.bf16.mxu0 0
      %1081 = vmatpush1.bf16.xpose.msra.mxu0 0
      %1082 = vmatprep.subr.bf16.mxu0 0
      %1083 = vmatpush1.bf16.xpose.msra.mxu0 0
      %1084 = vmatprep.subr.bf16.mxu0 0
      %1085 = vmatpush1.bf16.xpose.msra.mxu0 0
      %1086 = vmatprep.subr.bf16.mxu0 0
      %1087 = vmatpush1.bf16.xpose.msra.mxu0 0
      %1088 = vmatprep.subr.bf16.mxu0 0
      %1089 = vmatpush1.bf16.xpose.msra.mxu0 0
      %1090 = vmatprep.subr.bf16.mxu0 0
      %1091 = vmatpush1.bf16.xpose.msra.mxu0 0
      %1092 = vmatprep.subr.bf16.mxu0 0
      %1093 = vmatpush1.bf16.xpose.msra.mxu0 0
      %1094 = vmatprep.subr.bf16.mxu0 0
      %1095 = vmatpush1.bf16.xpose.msra.mxu0 %v1078
      %1096 = vmatprep.subr.bf16.mxu0 0
      %1097 = vmatpush2.bf16.xpose.msra.mxu0 0
      %1098 = vmatprep.subr.bf16.mxu0 0
      %1099 = vmatpush2.bf16.xpose.msra.mxu0 0
      %1100 = vmatprep.subr.bf16.mxu0 0
      %1101 = vmatpush2.bf16.xpose.msra.mxu0 0
      %1102 = vmatprep.subr.bf16.mxu0 0
      %1103 = vmatpush2.bf16.xpose.msra.mxu0 0
      %1104 = vmatprep.subr.bf16.mxu0 0
      %1105 = vmatpush2.bf16.xpose.msra.mxu0 0
      %1106 = vmatprep.subr.bf16.mxu0 0
      %1107 = vmatpush2.bf16.xpose.msra.mxu0 0
      %1108 = vmatprep.subr.bf16.mxu0 0
      %1109 = vmatpush2.bf16.xpose.msra.mxu0 0
      %1110 = vmatprep.subr.bf16.mxu0 0
      %1111 = vmatpush2.bf16.xpose.msra.mxu0 0
      %1112 = vmatprep.mubr.bf16.mxu0 0
      %1113 = vmatmul.mubr.bf16.gmra.mxu0 %v1075
      %v1114 = vpop.f32.mrf.mxu0
      %v1115 = vadd.f32 0.0, %v1114
      %v1116 = vpop.f32.mrf.mxu0
      %v1117 = vpop.f32.mrf.mxu0
      %v1118 = vadd.f32 0.0, %v1117
      %v1119 = vpop.f32.mrf.mxu0
      %1120 = vdwg.mxu0
      %1121 = vrot.lane.b32.xlu0 %v454, 112
      %v1122 = vpop.permute.xlu0 %1121
      %1123 = vrot.lane.b32.xlu0 %v454, 80
      %v1124 = vpop.permute.xlu0 %1123
      %v1126 = vsel %vm458, %v1122, 0
      %v1129 = vsel %vm458, %v1124, 0
      %1131 = vmatprep.subr.bf16.mxu0 0
      %1132 = vmatpush1.bf16.xpose.msra.mxu0 0
      %1133 = vmatprep.subr.bf16.mxu0 0
      %1134 = vmatpush1.bf16.xpose.msra.mxu0 0
      %1135 = vmatprep.subr.bf16.mxu0 0
      %1136 = vmatpush1.bf16.xpose.msra.mxu0 0
      %1137 = vmatprep.subr.bf16.mxu0 0
      %1138 = vmatpush1.bf16.xpose.msra.mxu0 0
      %1139 = vmatprep.subr.bf16.mxu0 0
      %1140 = vmatpush1.bf16.xpose.msra.mxu0 0
      %1141 = vmatprep.subr.bf16.mxu0 0
      %1142 = vmatpush1.bf16.xpose.msra.mxu0 0
      %1143 = vmatprep.subr.bf16.mxu0 0
      %1144 = vmatpush1.bf16.xpose.msra.mxu0 0
      %1145 = vmatprep.subr.bf16.mxu0 0
      %1146 = vmatpush1.bf16.xpose.msra.mxu0 %v1129
      %1147 = vmatprep.subr.bf16.mxu0 0
      %1148 = vmatpush2.bf16.xpose.msra.mxu0 0
      %1149 = vmatprep.subr.bf16.mxu0 0
      %1150 = vmatpush2.bf16.xpose.msra.mxu0 0
      %1151 = vmatprep.subr.bf16.mxu0 0
      %1152 = vmatpush2.bf16.xpose.msra.mxu0 0
      %1153 = vmatprep.subr.bf16.mxu0 0
      %1154 = vmatpush2.bf16.xpose.msra.mxu0 0
      %1155 = vmatprep.subr.bf16.mxu0 0
      %1156 = vmatpush2.bf16.xpose.msra.mxu0 0
      %1157 = vmatprep.subr.bf16.mxu0 0
      %1158 = vmatpush2.bf16.xpose.msra.mxu0 0
      %1159 = vmatprep.subr.bf16.mxu0 0
      %1160 = vmatpush2.bf16.xpose.msra.mxu0 0
      %1161 = vmatprep.subr.bf16.mxu0 0
      %1162 = vmatpush2.bf16.xpose.msra.mxu0 0
      %1163 = vmatprep.mubr.bf16.mxu0 0
      %1164 = vmatmul.mubr.bf16.gmra.mxu0 %v1126
      %v1165 = vpop.f32.mrf.mxu0
      %v1166 = vadd.f32 0.0, %v1165
      %v1167 = vpop.f32.mrf.mxu0
      %v1168 = vpop.f32.mrf.mxu0
      %v1169 = vadd.f32 0.0, %v1168
      %v1170 = vpop.f32.mrf.mxu0
      %1171 = vdwg.mxu0
      %v1172 = vmul.f32 %v1115, 0.35355338
      %v1173 = vmul.f32 %v1118, 0.35355338
      %v1174 = vmul.f32 %v1166, 0.35355338
      %v1175 = vmul.f32 %v1169, 0.35355338
      %v1176 = vsel %vm560, %v1172, -inf
      %1177 = vmax.xlane.f32.xlu0 %v1176
      %v1178 = vpop.xlane.xlu0 %1177
      %v1179 = vsel %vm560, %v1173, -inf
      %1180 = vmax.xlane.f32.xlu0 %v1179
      %v1181 = vpop.xlane.xlu0 %1180
      %v1182 = vsel %vm560, %v1174, -inf
      %1183 = vmax.xlane.f32.xlu0 %v1182
      %v1184 = vpop.xlane.xlu0 %1183
      %v1185 = vsel %vm560, %v1175, -inf
      %1186 = vmax.xlane.f32.xlu0 %v1185
      %v1187 = vpop.xlane.xlu0 %1186
      %v1188 = vsub.f32 %v1172, %v1178
      %v1189 = vsub.f32 %v1173, %v1181
      %v1190 = vsub.f32 %v1174, %v1184
      %v1191 = vsub.f32 %v1175, %v1187
      %v1192 = vmul.f32 %v1188, 1.442695
      %v1193 = vpow.pop %v1192
      %v1194 = vmul.f32 %v1189, 1.442695
      %v1195 = vpow.pop %v1194
      %v1196 = vmul.f32 %v1190, 1.442695
      %v1197 = vpow.pop %v1196
      %v1198 = vmul.f32 %v1191, 1.442695
      %v1199 = vpow.pop %v1198
      %v1200 = vsel %vm560, %v1193, 0.0
      %1201 = vadd.xlane.f32.xlu0 %v1200
      %v1202 = vpop.xlane.xlu0 %1201
      %v1203 = vsel %vm560, %v1195, 0.0
      %1204 = vadd.xlane.f32.xlu0 %v1203
      %v1205 = vpop.xlane.xlu0 %1204
      %v1206 = vsel %vm560, %v1197, 0.0
      %1207 = vadd.xlane.f32.xlu0 %v1206
      %v1208 = vpop.xlane.xlu0 %1207
      %v1209 = vsel %vm560, %v1199, 0.0
      %1210 = vadd.xlane.f32.xlu0 %v1209
      %v1211 = vpop.xlane.xlu0 %1210
      %v1212 = vpack.c.bf16 %v1195, %v1193
      %v1213 = vpack.c.bf16 %v1199, %v1197
      %1214 = vrot.lane.b32.xlu0 %v453, 48
      %v1215 = vpop.permute.xlu0 %1214
      %v1218 = vsel %vm560, %v1212, 0
      %1220 = vmatprep.subr.bf16.mxu0 0
      %1221 = vmatpush1.bf16.msra.mxu0 0
      %1222 = vmatprep.subr.bf16.mxu0 0
      %1223 = vmatpush1.bf16.msra.mxu0 0
      %1224 = vmatprep.subr.bf16.mxu0 0
      %1225 = vmatpush1.bf16.msra.mxu0 0
      %1226 = vmatprep.subr.bf16.mxu0 0
      %1227 = vmatpush1.bf16.msra.mxu0 0
      %1228 = vmatprep.subr.bf16.mxu0 0
      %1229 = vmatpush1.bf16.msra.mxu0 0
      %1230 = vmatprep.subr.bf16.mxu0 0
      %1231 = vmatpush1.bf16.msra.mxu0 0
      %1232 = vmatprep.subr.bf16.mxu0 0
      %1233 = vmatpush1.bf16.msra.mxu0 0
      %1234 = vmatprep.subr.bf16.mxu0 0
      %1235 = vmatpush1.bf16.msra.mxu0 %v1215
      %1236 = vmatprep.subr.bf16.mxu0 0
      %1237 = vmatpush2.bf16.msra.mxu0 0
      %1238 = vmatprep.subr.bf16.mxu0 0
      %1239 = vmatpush2.bf16.msra.mxu0 0
      %1240 = vmatprep.subr.bf16.mxu0 0
      %1241 = vmatpush2.bf16.msra.mxu0 0
      %1242 = vmatprep.subr.bf16.mxu0 0
      %1243 = vmatpush2.bf16.msra.mxu0 0
      %1244 = vmatprep.subr.bf16.mxu0 0
      %1245 = vmatpush2.bf16.msra.mxu0 0
      %1246 = vmatprep.subr.bf16.mxu0 0
      %1247 = vmatpush2.bf16.msra.mxu0 0
      %1248 = vmatprep.subr.bf16.mxu0 0
      %1249 = vmatpush2.bf16.msra.mxu0 0
      %1250 = vmatprep.subr.bf16.mxu0 0
      %1251 = vmatpush2.bf16.msra.mxu0 0
      %1252 = vmatprep.mubr.bf16.mxu0 0
      %1253 = vmatmul.mubr.bf16.gmra.mxu0 %v1218
      %v1254 = vpop.f32.mrf.mxu0
      %v1255 = vadd.f32 0.0, %v1254
      %v1256 = vpop.f32.mrf.mxu0
      %v1257 = vpop.f32.mrf.mxu0
      %v1258 = vadd.f32 0.0, %v1257
      %v1259 = vpop.f32.mrf.mxu0
      %1260 = vdwg.mxu0
      %1261 = vrot.lane.b32.xlu0 %v454, 48
      %v1262 = vpop.permute.xlu0 %1261
      %v1265 = vsel %vm560, %v1213, 0
      %1267 = vmatprep.subr.bf16.mxu0 0
      %1268 = vmatpush1.bf16.msra.mxu0 0
      %1269 = vmatprep.subr.bf16.mxu0 0
      %1270 = vmatpush1.bf16.msra.mxu0 0
      %1271 = vmatprep.subr.bf16.mxu0 0
      %1272 = vmatpush1.bf16.msra.mxu0 0
      %1273 = vmatprep.subr.bf16.mxu0 0
      %1274 = vmatpush1.bf16.msra.mxu0 0
      %1275 = vmatprep.subr.bf16.mxu0 0
      %1276 = vmatpush1.bf16.msra.mxu0 0
      %1277 = vmatprep.subr.bf16.mxu0 0
      %1278 = vmatpush1.bf16.msra.mxu0 0
      %1279 = vmatprep.subr.bf16.mxu0 0
      %1280 = vmatpush1.bf16.msra.mxu0 0
      %1281 = vmatprep.subr.bf16.mxu0 0
      %1282 = vmatpush1.bf16.msra.mxu0 %v1262
      %1283 = vmatprep.subr.bf16.mxu0 0
      %1284 = vmatpush2.bf16.msra.mxu0 0
      %1285 = vmatprep.subr.bf16.mxu0 0
      %1286 = vmatpush2.bf16.msra.mxu0 0
      %1287 = vmatprep.subr.bf16.mxu0 0
      %1288 = vmatpush2.bf16.msra.mxu0 0
      %1289 = vmatprep.subr.bf16.mxu0 0
      %1290 = vmatpush2.bf16.msra.mxu0 0
      %1291 = vmatprep.subr.bf16.mxu0 0
      %1292 = vmatpush2.bf16.msra.mxu0 0
      %1293 = vmatprep.subr.bf16.mxu0 0
      %1294 = vmatpush2.bf16.msra.mxu0 0
      %1295 = vmatprep.subr.bf16.mxu0 0
      %1296 = vmatpush2.bf16.msra.mxu0 0
      %1297 = vmatprep.subr.bf16.mxu0 0
      %1298 = vmatpush2.bf16.msra.mxu0 0
      %1299 = vmatprep.mubr.bf16.mxu0 0
      %1300 = vmatmul.mubr.bf16.gmra.mxu0 %v1265
      %v1301 = vpop.f32.mrf.mxu0
      %v1302 = vadd.f32 0.0, %v1301
      %v1303 = vpop.f32.mrf.mxu0
      %v1304 = vpop.f32.mrf.mxu0
      %v1305 = vadd.f32 0.0, %v1304
      %v1306 = vpop.f32.mrf.mxu0
      %1307 = vdwg.mxu0
      %v1308 = vrcp.pop %v1202
      %v1309 = vrcp.pop %v1205
      %v1310 = vrcp.pop %v1208
      %v1311 = vrcp.pop %v1211
      %v1312 = vmul.f32 %v1255, %v1308
      %v1313 = vmul.f32 %v1258, %v1309
      %v1314 = vmul.f32 %v1302, %v1310
      %v1315 = vmul.f32 %v1305, %v1311
      %v1316 = vpack.c.bf16 %v1313, %v1312
      %v1317 = vpack.c.bf16 %v1315, %v1314
      %v1318 = vld [vmem:[%s339 + $0x8] sm:$0xf]
      %v1320 = vsel %vm458, %v1316, 0
      %v1323 = vsel %vm458, %v1317, 0
      %v1326 = vsel %vm959, %v1318, 0
      %1328 = vmatprep.subr.bf16.mxu0 0
      %1329 = vmatpush1.bf16.msra.mxu0 0
      %1330 = vmatprep.subr.bf16.mxu0 0
      %1331 = vmatpush1.bf16.msra.mxu0 0
      %1332 = vmatprep.subr.bf16.mxu0 0
      %1333 = vmatpush1.bf16.msra.mxu0 0
      %1334 = vmatprep.subr.bf16.mxu0 0
      %1335 = vmatpush1.bf16.msra.mxu0 0
      %1336 = vmatprep.subr.bf16.mxu0 0
      %1337 = vmatpush1.bf16.msra.mxu0 0
      %1338 = vmatprep.subr.bf16.mxu0 0
      %1339 = vmatpush1.bf16.msra.mxu0 0
      %1340 = vmatprep.subr.bf16.mxu0 0
      %1341 = vmatpush1.bf16.msra.mxu0 0
      %1342 = vmatprep.subr.bf16.mxu0 0
      %1343 = vmatpush1.bf16.msra.mxu0 %v1326
      %1344 = vmatprep.subr.bf16.mxu0 0
      %1345 = vmatpush2.bf16.msra.mxu0 0
      %1346 = vmatprep.subr.bf16.mxu0 0
      %1347 = vmatpush2.bf16.msra.mxu0 0
      %1348 = vmatprep.subr.bf16.mxu0 0
      %1349 = vmatpush2.bf16.msra.mxu0 0
      %1350 = vmatprep.subr.bf16.mxu0 0
      %1351 = vmatpush2.bf16.msra.mxu0 0
      %1352 = vmatprep.subr.bf16.mxu0 0
      %1353 = vmatpush2.bf16.msra.mxu0 0
      %1354 = vmatprep.subr.bf16.mxu0 0
      %1355 = vmatpush2.bf16.msra.mxu0 0
      %1356 = vmatprep.subr.bf16.mxu0 0
      %1357 = vmatpush2.bf16.msra.mxu0 0
      %1358 = vmatprep.subr.bf16.mxu0 0
      %1359 = vmatpush2.bf16.msra.mxu0 0
      %1360 = vmatprep.mubr.bf16.mxu0 0
      %1361 = vmatmul.mubr.bf16.gmra.mxu0 %v1320
      %v1362 = vpop.f32.mrf.mxu0
      %v1363 = vadd.f32 0.0, %v1362
      %v1364 = vpop.f32.mrf.mxu0
      %v1365 = vpop.f32.mrf.mxu0
      %v1366 = vadd.f32 0.0, %v1365
      %v1367 = vpop.f32.mrf.mxu0
      %1368 = vmatprep.mubr.bf16.mxu0 0
      %1369 = vmatmul.mubr.bf16.gmra.mxu0 %v1323
      %v1370 = vpop.f32.mrf.mxu0
      %v1371 = vadd.f32 0.0, %v1370
      %v1372 = vpop.f32.mrf.mxu0
      %v1373 = vpop.f32.mrf.mxu0
      %v1374 = vadd.f32 0.0, %v1373
      %v1375 = vpop.f32.mrf.mxu0
      %1376 = vdwg.mxu0
      %v1377 = vadd.f32 %v1056, %v1363
      %v1378 = vadd.f32 %v1059, %v1366
      %v1379 = vadd.f32 %v1064, %v1371
      %v1380 = vadd.f32 %v1067, %v1374
      %1381 = vrot.lane.b32.xlu0 %v453, 104
      %v1382 = vpop.permute.xlu0 %1381
      %1383 = vrot.lane.b32.xlu0 %v453, 72
      %v1384 = vpop.permute.xlu0 %1383
      %v1386 = vsel %vm458, %v1382, 0
      %v1389 = vsel %vm458, %v1384, 0
      %1391 = vmatprep.subr.bf16.mxu0 0
      %1392 = vmatpush1.bf16.xpose.msra.mxu0 0
      %1393 = vmatprep.subr.bf16.mxu0 0
      %1394 = vmatpush1.bf16.xpose.msra.mxu0 0
      %1395 = vmatprep.subr.bf16.mxu0 0
      %1396 = vmatpush1.bf16.xpose.msra.mxu0 0
      %1397 = vmatprep.subr.bf16.mxu0 0
      %1398 = vmatpush1.bf16.xpose.msra.mxu0 0
      %1399 = vmatprep.subr.bf16.mxu0 0
      %1400 = vmatpush1.bf16.xpose.msra.mxu0 0
      %1401 = vmatprep.subr.bf16.mxu0 0
      %1402 = vmatpush1.bf16.xpose.msra.mxu0 0
      %1403 = vmatprep.subr.bf16.mxu0 0
      %1404 = vmatpush1.bf16.xpose.msra.mxu0 0
      %1405 = vmatprep.subr.bf16.mxu0 0
      %1406 = vmatpush1.bf16.xpose.msra.mxu0 %v1389
      %1407 = vmatprep.subr.bf16.mxu0 0
      %1408 = vmatpush2.bf16.xpose.msra.mxu0 0
      %1409 = vmatprep.subr.bf16.mxu0 0
      %1410 = vmatpush2.bf16.xpose.msra.mxu0 0
      %1411 = vmatprep.subr.bf16.mxu0 0
      %1412 = vmatpush2.bf16.xpose.msra.mxu0 0
      %1413 = vmatprep.subr.bf16.mxu0 0
      %1414 = vmatpush2.bf16.xpose.msra.mxu0 0
      %1415 = vmatprep.subr.bf16.mxu0 0
      %1416 = vmatpush2.bf16.xpose.msra.mxu0 0
      %1417 = vmatprep.subr.bf16.mxu0 0
      %1418 = vmatpush2.bf16.xpose.msra.mxu0 0
      %1419 = vmatprep.subr.bf16.mxu0 0
      %1420 = vmatpush2.bf16.xpose.msra.mxu0 0
      %1421 = vmatprep.subr.bf16.mxu0 0
      %1422 = vmatpush2.bf16.xpose.msra.mxu0 0
      %1423 = vmatprep.mubr.bf16.mxu0 0
      %1424 = vmatmul.mubr.bf16.gmra.mxu0 %v1386
      %v1425 = vpop.f32.mrf.mxu0
      %v1426 = vadd.f32 0.0, %v1425
      %v1427 = vpop.f32.mrf.mxu0
      %v1428 = vpop.f32.mrf.mxu0
      %v1429 = vadd.f32 0.0, %v1428
      %v1430 = vpop.f32.mrf.mxu0
      %1431 = vdwg.mxu0
      %1432 = vrot.lane.b32.xlu0 %v454, 104
      %v1433 = vpop.permute.xlu0 %1432
      %1434 = vrot.lane.b32.xlu0 %v454, 72
      %v1435 = vpop.permute.xlu0 %1434
      %v1437 = vsel %vm458, %v1433, 0
      %v1440 = vsel %vm458, %v1435, 0
      %1442 = vmatprep.subr.bf16.mxu0 0
      %1443 = vmatpush1.bf16.xpose.msra.mxu0 0
      %1444 = vmatprep.subr.bf16.mxu0 0
      %1445 = vmatpush1.bf16.xpose.msra.mxu0 0
      %1446 = vmatprep.subr.bf16.mxu0 0
      %1447 = vmatpush1.bf16.xpose.msra.mxu0 0
      %1448 = vmatprep.subr.bf16.mxu0 0
      %1449 = vmatpush1.bf16.xpose.msra.mxu0 0
      %1450 = vmatprep.subr.bf16.mxu0 0
      %1451 = vmatpush1.bf16.xpose.msra.mxu0 0
      %1452 = vmatprep.subr.bf16.mxu0 0
      %1453 = vmatpush1.bf16.xpose.msra.mxu0 0
      %1454 = vmatprep.subr.bf16.mxu0 0
      %1455 = vmatpush1.bf16.xpose.msra.mxu0 0
      %1456 = vmatprep.subr.bf16.mxu0 0
      %1457 = vmatpush1.bf16.xpose.msra.mxu0 %v1440
      %1458 = vmatprep.subr.bf16.mxu0 0
      %1459 = vmatpush2.bf16.xpose.msra.mxu0 0
      %1460 = vmatprep.subr.bf16.mxu0 0
      %1461 = vmatpush2.bf16.xpose.msra.mxu0 0
      %1462 = vmatprep.subr.bf16.mxu0 0
      %1463 = vmatpush2.bf16.xpose.msra.mxu0 0
      %1464 = vmatprep.subr.bf16.mxu0 0
      %1465 = vmatpush2.bf16.xpose.msra.mxu0 0
      %1466 = vmatprep.subr.bf16.mxu0 0
      %1467 = vmatpush2.bf16.xpose.msra.mxu0 0
      %1468 = vmatprep.subr.bf16.mxu0 0
      %1469 = vmatpush2.bf16.xpose.msra.mxu0 0
      %1470 = vmatprep.subr.bf16.mxu0 0
      %1471 = vmatpush2.bf16.xpose.msra.mxu0 0
      %1472 = vmatprep.subr.bf16.mxu0 0
      %1473 = vmatpush2.bf16.xpose.msra.mxu0 0
      %1474 = vmatprep.mubr.bf16.mxu0 0
      %1475 = vmatmul.mubr.bf16.gmra.mxu0 %v1437
      %v1476 = vpop.f32.mrf.mxu0
      %v1477 = vadd.f32 0.0, %v1476
      %v1478 = vpop.f32.mrf.mxu0
      %v1479 = vpop.f32.mrf.mxu0
      %v1480 = vadd.f32 0.0, %v1479
      %v1481 = vpop.f32.mrf.mxu0
      %1482 = vdwg.mxu0
      %v1483 = vmul.f32 %v1426, 0.35355338
      %v1484 = vmul.f32 %v1429, 0.35355338
      %v1485 = vmul.f32 %v1477, 0.35355338
      %v1486 = vmul.f32 %v1480, 0.35355338
      %v1487 = vsel %vm560, %v1483, -inf
      %1488 = vmax.xlane.f32.xlu0 %v1487
      %v1489 = vpop.xlane.xlu0 %1488
      %v1490 = vsel %vm560, %v1484, -inf
      %1491 = vmax.xlane.f32.xlu0 %v1490
      %v1492 = vpop.xlane.xlu0 %1491
      %v1493 = vsel %vm560, %v1485, -inf
      %1494 = vmax.xlane.f32.xlu0 %v1493
      %v1495 = vpop.xlane.xlu0 %1494
      %v1496 = vsel %vm560, %v1486, -inf
      %1497 = vmax.xlane.f32.xlu0 %v1496
      %v1498 = vpop.xlane.xlu0 %1497
      %v1499 = vsub.f32 %v1483, %v1489
      %v1500 = vsub.f32 %v1484, %v1492
      %v1501 = vsub.f32 %v1485, %v1495
      %v1502 = vsub.f32 %v1486, %v1498
      %v1503 = vmul.f32 %v1499, 1.442695
      %v1504 = vpow.pop %v1503
      %v1505 = vmul.f32 %v1500, 1.442695
      %v1506 = vpow.pop %v1505
      %v1507 = vmul.f32 %v1501, 1.442695
      %v1508 = vpow.pop %v1507
      %v1509 = vmul.f32 %v1502, 1.442695
      %v1510 = vpow.pop %v1509
      %v1511 = vsel %vm560, %v1504, 0.0
      %1512 = vadd.xlane.f32.xlu0 %v1511
      %v1513 = vpop.xlane.xlu0 %1512
      %v1514 = vsel %vm560, %v1506, 0.0
      %1515 = vadd.xlane.f32.xlu0 %v1514
      %v1516 = vpop.xlane.xlu0 %1515
      %v1517 = vsel %vm560, %v1508, 0.0
      %1518 = vadd.xlane.f32.xlu0 %v1517
      %v1519 = vpop.xlane.xlu0 %1518
      %v1520 = vsel %vm560, %v1510, 0.0
      %1521 = vadd.xlane.f32.xlu0 %v1520
      %v1522 = vpop.xlane.xlu0 %1521
      %v1523 = vpack.c.bf16 %v1506, %v1504
      %v1524 = vpack.c.bf16 %v1510, %v1508
      %1525 = vrot.lane.b32.xlu0 %v453, 40
      %v1526 = vpop.permute.xlu0 %1525
      %v1529 = vsel %vm560, %v1523, 0
      %1531 = vmatprep.subr.bf16.mxu0 0
      %1532 = vmatpush1.bf16.msra.mxu0 0
      %1533 = vmatprep.subr.bf16.mxu0 0
      %1534 = vmatpush1.bf16.msra.mxu0 0
      %1535 = vmatprep.subr.bf16.mxu0 0
      %1536 = vmatpush1.bf16.msra.mxu0 0
      %1537 = vmatprep.subr.bf16.mxu0 0
      %1538 = vmatpush1.bf16.msra.mxu0 0
      %1539 = vmatprep.subr.bf16.mxu0 0
      %1540 = vmatpush1.bf16.msra.mxu0 0
      %1541 = vmatprep.subr.bf16.mxu0 0
      %1542 = vmatpush1.bf16.msra.mxu0 0
      %1543 = vmatprep.subr.bf16.mxu0 0
      %1544 = vmatpush1.bf16.msra.mxu0 0
      %1545 = vmatprep.subr.bf16.mxu0 0
      %1546 = vmatpush1.bf16.msra.mxu0 %v1526
      %1547 = vmatprep.subr.bf16.mxu0 0
      %1548 = vmatpush2.bf16.msra.mxu0 0
      %1549 = vmatprep.subr.bf16.mxu0 0
      %1550 = vmatpush2.bf16.msra.mxu0 0
      %1551 = vmatprep.subr.bf16.mxu0 0
      %1552 = vmatpush2.bf16.msra.mxu0 0
      %1553 = vmatprep.subr.bf16.mxu0 0
      %1554 = vmatpush2.bf16.msra.mxu0 0
      %1555 = vmatprep.subr.bf16.mxu0 0
      %1556 = vmatpush2.bf16.msra.mxu0 0
      %1557 = vmatprep.subr.bf16.mxu0 0
      %1558 = vmatpush2.bf16.msra.mxu0 0
      %1559 = vmatprep.subr.bf16.mxu0 0
      %1560 = vmatpush2.bf16.msra.mxu0 0
      %1561 = vmatprep.subr.bf16.mxu0 0
      %1562 = vmatpush2.bf16.msra.mxu0 0
      %1563 = vmatprep.mubr.bf16.mxu0 0
      %1564 = vmatmul.mubr.bf16.gmra.mxu0 %v1529
      %v1565 = vpop.f32.mrf.mxu0
      %v1566 = vadd.f32 0.0, %v1565
      %v1567 = vpop.f32.mrf.mxu0
      %v1568 = vpop.f32.mrf.mxu0
      %v1569 = vadd.f32 0.0, %v1568
      %v1570 = vpop.f32.mrf.mxu0
      %1571 = vdwg.mxu0
      %1572 = vrot.lane.b32.xlu0 %v454, 40
      %v1573 = vpop.permute.xlu0 %1572
      %v1576 = vsel %vm560, %v1524, 0
      %1578 = vmatprep.subr.bf16.mxu0 0
      %1579 = vmatpush1.bf16.msra.mxu0 0
      %1580 = vmatprep.subr.bf16.mxu0 0
      %1581 = vmatpush1.bf16.msra.mxu0 0
      %1582 = vmatprep.subr.bf16.mxu0 0
      %1583 = vmatpush1.bf16.msra.mxu0 0
      %1584 = vmatprep.subr.bf16.mxu0 0
      %1585 = vmatpush1.bf16.msra.mxu0 0
      %1586 = vmatprep.subr.bf16.mxu0 0
      %1587 = vmatpush1.bf16.msra.mxu0 0
      %1588 = vmatprep.subr.bf16.mxu0 0
      %1589 = vmatpush1.bf16.msra.mxu0 0
      %1590 = vmatprep.subr.bf16.mxu0 0
      %1591 = vmatpush1.bf16.msra.mxu0 0
      %1592 = vmatprep.subr.bf16.mxu0 0
      %1593 = vmatpush1.bf16.msra.mxu0 %v1573
      %1594 = vmatprep.subr.bf16.mxu0 0
      %1595 = vmatpush2.bf16.msra.mxu0 0
      %1596 = vmatprep.subr.bf16.mxu0 0
      %1597 = vmatpush2.bf16.msra.mxu0 0
      %1598 = vmatprep.subr.bf16.mxu0 0
      %1599 = vmatpush2.bf16.msra.mxu0 0
      %1600 = vmatprep.subr.bf16.mxu0 0
      %1601 = vmatpush2.bf16.msra.mxu0 0
      %1602 = vmatprep.subr.bf16.mxu0 0
      %1603 = vmatpush2.bf16.msra.mxu0 0
      %1604 = vmatprep.subr.bf16.mxu0 0
      %1605 = vmatpush2.bf16.msra.mxu0 0
      %1606 = vmatprep.subr.bf16.mxu0 0
      %1607 = vmatpush2.bf16.msra.mxu0 0
      %1608 = vmatprep.subr.bf16.mxu0 0
      %1609 = vmatpush2.bf16.msra.mxu0 0
      %1610 = vmatprep.mubr.bf16.mxu0 0
      %1611 = vmatmul.mubr.bf16.gmra.mxu0 %v1576
      %v1612 = vpop.f32.mrf.mxu0
      %v1613 = vadd.f32 0.0, %v1612
      %v1614 = vpop.f32.mrf.mxu0
      %v1615 = vpop.f32.mrf.mxu0
      %v1616 = vadd.f32 0.0, %v1615
      %v1617 = vpop.f32.mrf.mxu0
      %1618 = vdwg.mxu0
      %v1619 = vrcp.pop %v1513
      %v1620 = vrcp.pop %v1516
      %v1621 = vrcp.pop %v1519
      %v1622 = vrcp.pop %v1522
      %v1623 = vmul.f32 %v1566, %v1619
      %v1624 = vmul.f32 %v1569, %v1620
      %v1625 = vmul.f32 %v1613, %v1621
      %v1626 = vmul.f32 %v1616, %v1622
      %v1627 = vpack.c.bf16 %v1624, %v1623
      %v1628 = vpack.c.bf16 %v1626, %v1625
      %v1629 = vld [vmem:[%s339 + $0xc] sm:$0xf]
      %v1631 = vsel %vm458, %v1627, 0
      %v1634 = vsel %vm458, %v1628, 0
      %v1637 = vsel %vm959, %v1629, 0
      %1639 = vmatprep.subr.bf16.mxu0 0
      %1640 = vmatpush1.bf16.msra.mxu0 0
      %1641 = vmatprep.subr.bf16.mxu0 0
      %1642 = vmatpush1.bf16.msra.mxu0 0
      %1643 = vmatprep.subr.bf16.mxu0 0
      %1644 = vmatpush1.bf16.msra.mxu0 0
      %1645 = vmatprep.subr.bf16.mxu0 0
      %1646 = vmatpush1.bf16.msra.mxu0 0
      %1647 = vmatprep.subr.bf16.mxu0 0
      %1648 = vmatpush1.bf16.msra.mxu0 0
      %1649 = vmatprep.subr.bf16.mxu0 0
      %1650 = vmatpush1.bf16.msra.mxu0 0
      %1651 = vmatprep.subr.bf16.mxu0 0
      %1652 = vmatpush1.bf16.msra.mxu0 0
      %1653 = vmatprep.subr.bf16.mxu0 0
      %1654 = vmatpush1.bf16.msra.mxu0 %v1637
      %1655 = vmatprep.subr.bf16.mxu0 0
      %1656 = vmatpush2.bf16.msra.mxu0 0
      %1657 = vmatprep.subr.bf16.mxu0 0
      %1658 = vmatpush2.bf16.msra.mxu0 0
      %1659 = vmatprep.subr.bf16.mxu0 0
      %1660 = vmatpush2.bf16.msra.mxu0 0
      %1661 = vmatprep.subr.bf16.mxu0 0
      %1662 = vmatpush2.bf16.msra.mxu0 0
      %1663 = vmatprep.subr.bf16.mxu0 0
      %1664 = vmatpush2.bf16.msra.mxu0 0
      %1665 = vmatprep.subr.bf16.mxu0 0
      %1666 = vmatpush2.bf16.msra.mxu0 0
      %1667 = vmatprep.subr.bf16.mxu0 0
      %1668 = vmatpush2.bf16.msra.mxu0 0
      %1669 = vmatprep.subr.bf16.mxu0 0
      %1670 = vmatpush2.bf16.msra.mxu0 0
      %1671 = vmatprep.mubr.bf16.mxu0 0
      %1672 = vmatmul.mubr.bf16.gmra.mxu0 %v1631
      %v1673 = vpop.f32.mrf.mxu0
      %v1674 = vadd.f32 0.0, %v1673
      %v1675 = vpop.f32.mrf.mxu0
      %v1676 = vpop.f32.mrf.mxu0
      %v1677 = vadd.f32 0.0, %v1676
      %v1678 = vpop.f32.mrf.mxu0
      %1679 = vmatprep.mubr.bf16.mxu0 0
      %1680 = vmatmul.mubr.bf16.gmra.mxu0 %v1634
      %v1681 = vpop.f32.mrf.mxu0
      %v1682 = vadd.f32 0.0, %v1681
      %v1683 = vpop.f32.mrf.mxu0
      %v1684 = vpop.f32.mrf.mxu0
      %v1685 = vadd.f32 0.0, %v1684
      %v1686 = vpop.f32.mrf.mxu0
      %1687 = vdwg.mxu0
      %v1688 = vadd.f32 %v1377, %v1674
      %v1689 = vadd.f32 %v1378, %v1677
      %v1690 = vadd.f32 %v1379, %v1682
      %v1691 = vadd.f32 %v1380, %v1685
      %v1692 = vld [vmem:[%s7] sm:$0xff]
      %v1693 = vld [vmem:[%s7 + $0x8] sm:$0xff]
      %v1694 = vld [vmem:[%s7 + $0x10] sm:$0xff]
      %v1695 = vld [vmem:[%s7 + $0x18] sm:$0xff]
      %v1696 = vadd.f32 %v1692, %v1688
      %v1697 = vadd.f32 %v1693, %v1689
      %v1698 = vadd.f32 %v1694, %v1690
      %v1699 = vadd.f32 %v1695, %v1691
      %1700 = vst.msk [vmem:[#allocation2] sm:$0xff] %vm397, %v1696
      %1701 = vst.msk [vmem:[#allocation2 + $0x8] sm:$0xff] %vm397, %v1697
      %1702 = vst.msk [vmem:[#allocation2 + $0x10] sm:$0xff] %vm397, %v1698
      %1703 = vst.msk [vmem:[#allocation2 + $0x18] sm:$0xff] %vm397, %v1699
      %v1704 = vld [vmem:[#allocation2] sm:$0xff]
      %v1705 = vld [vmem:[#allocation2 + $0x8] sm:$0xff]
      %v1706 = vld [vmem:[#allocation2 + $0x10] sm:$0xff]
      %v1707 = vld [vmem:[#allocation2 + $0x18] sm:$0xff]
      %v1708 = vsel %vm397, %v1704, 0.0
      %v1709 = vsel %vm397, %v1706, 0.0
      %v1710 = vadd.f32 %v1708, %v1709
      %1711 = vadd.xlane.f32.xlu0 %v1710
      %v1712 = vpop.xlane.xlu0 %1711
      %v1713 = vsel %vm397, %v1705, 0.0
      %v1714 = vsel %vm397, %v1707, 0.0
      %v1715 = vadd.f32 %v1713, %v1714
      %1716 = vadd.xlane.f32.xlu0 %v1715
      %v1717 = vpop.xlane.xlu0 %1716
      %v1718 = vrcp.pop 64.0
      %v1719 = vmul.f32 %v1712, %v1718
      %v1720 = vmul.f32 %v1717, %v1718
      %v1721 = vsub.f32 %v1704, %v1719
      %v1722 = vsub.f32 %v1705, %v1720
      %v1723 = vsub.f32 %v1706, %v1719
      %v1724 = vsub.f32 %v1707, %v1720
      %v1725 = vmul.f32 %v1721, %v1721
      %v1726 = vmul.f32 %v1722, %v1722
      %v1727 = vmul.f32 %v1723, %v1723
      %v1728 = vmul.f32 %v1724, %v1724
      %v1729 = vsel %vm397, %v1725, 0.0
      %v1730 = vsel %vm397, %v1727, 0.0
      %v1731 = vadd.f32 %v1729, %v1730
      %1732 = vadd.xlane.f32.xlu0 %v1731
      %v1733 = vpop.xlane.xlu0 %1732
      %v1734 = vsel %vm397, %v1726, 0.0
      %v1735 = vsel %vm397, %v1728, 0.0
      %v1736 = vadd.f32 %v1734, %v1735
      %1737 = vadd.xlane.f32.xlu0 %v1736
      %v1738 = vpop.xlane.xlu0 %1737
      %v1739 = vmul.f32 %v1733, %v1718
      %v1740 = vmul.f32 %v1738, %v1718
      %v1741 = vadd.f32 %v1739, 1e-05
      %v1742 = vadd.f32 %v1740, 1e-05
      %v1743 = vrsqrt.pop %v1741
      %v1744 = vrsqrt.pop %v1742
      %v1745 = vmul.f32 %v372, %v1743
      %v1746 = vmul.f32 %v373, %v1744
      %v1747 = vmul.f32 %v1719, %v1745
      %v1748 = vmul.f32 %v1720, %v1746
      %1751 = vrot.lane.b32.xlu0 %v1747, 1
      %v1752 = vpop.permute.xlu0 %1751
      %1753 = vrot.lane.b32.xlu0 %v1748, 1
      %v1754 = vpop.permute.xlu0 %1753
      %v1757 = vsub.f32 %v372, %v1752
      %v1758 = vsub.f32 %v373, %v1754
      %1760 = vset.pattern.permute.xlu0 0
      %1761 = vperm.xlu0 %1760, %v1745
      %v1762 = vpop.permute.xlu0 %1761
      %1765 = vset.pattern.permute.xlu0 0
      %1766 = vperm.xlu0 %1765, %v1746
      %v1767 = vpop.permute.xlu0 %1766
      %v1769 = vmul.f32 %v1704, %v1762
      %v1770 = vmul.f32 %v1705, %v1767
      %v1771 = vmul.f32 %v1706, %v1762
      %v1772 = vmul.f32 %v1707, %v1767
      %1774 = vset.pattern.permute.xlu0 1
      %1775 = vperm.xlu0 %1774, %v1757
      %v1776 = vpop.permute.xlu0 %1775
      %1779 = vset.pattern.permute.xlu0 1
      %1780 = vperm.xlu0 %1779, %v1758
      %v1781 = vpop.permute.xlu0 %1780
      %v1783 = vadd.f32 %v1769, %v1776
      %v1784 = vadd.f32 %v1770, %v1781
      %v1785 = vadd.f32 %v1771, %v1776
      %v1786 = vadd.f32 %v1772, %v1781
      %v1787 = vpack.c.bf16 %v1784, %v1783
      %v1788 = vpack.c.bf16 %v1786, %v1785
      %v1789 = vld [vmem:[%s344] sm:$0xf]
      %v1790 = vld [vmem:[%s344 + $0x4] sm:$0xf]
      %v1791 = vld [vmem:[%s344 + $0x8] sm:$0xf]
      %v1792 = vld [vmem:[%s344 + $0xc] sm:$0xf]
      %v1794 = vlaneseq
      %v1795 = vshrl.u32 %v1794, 7
      %v1796 = vsub.s32 0, %v1795
      %v1797 = vrot.slane %v374, %v1796
      %v1803 = vunpack.c.l.b16 %v1789
      %v1804 = vunpack.c.l.b16 %v1790
      %v1805 = vunpack.c.l.b16 %v1791
      %v1806 = vunpack.c.l.b16 %v1792
      %v1807 = vpack.c.b16 %v1804, %v1803
      %v1808 = vpack.c.b16 %v1806, %v1805
      %v1812 = vsel %vm397, %v1787, 0
      %v1815 = vsel %vm397, %v1788, 0
      %1817 = vmatprep.subr.bf16.mxu0 0
      %1818 = vmatpush1.bf16.msra.mxu0 0
      %1819 = vmatprep.subr.bf16.mxu0 0
      %1820 = vmatpush1.bf16.msra.mxu0 0
      %1821 = vmatprep.subr.bf16.mxu0 0
      %1822 = vmatpush1.bf16.msra.mxu0 0
      %1823 = vmatprep.subr.bf16.mxu0 0
      %1824 = vmatpush1.bf16.msra.mxu0 0
      %1825 = vmatprep.subr.bf16.mxu0 0
      %1826 = vmatpush1.bf16.msra.mxu0 0
      %1827 = vmatprep.subr.bf16.mxu0 0
      %1828 = vmatpush1.bf16.msra.mxu0 0
      %1829 = vmatprep.subr.bf16.mxu0 0
      %1830 = vmatpush1.bf16.msra.mxu0 %v1808
      %1831 = vmatprep.subr.bf16.mxu0 0
      %1832 = vmatpush1.bf16.msra.mxu0 %v1807
      %1833 = vmatprep.subr.bf16.mxu0 0
      %1834 = vmatpush2.bf16.msra.mxu0 0
      %1835 = vmatprep.subr.bf16.mxu0 0
      %1836 = vmatpush2.bf16.msra.mxu0 0
      %1837 = vmatprep.subr.bf16.mxu0 0
      %1838 = vmatpush2.bf16.msra.mxu0 0
      %1839 = vmatprep.subr.bf16.mxu0 0
      %1840 = vmatpush2.bf16.msra.mxu0 0
      %1841 = vmatprep.subr.bf16.mxu0 0
      %1842 = vmatpush2.bf16.msra.mxu0 0
      %1843 = vmatprep.subr.bf16.mxu0 0
      %1844 = vmatpush2.bf16.msra.mxu0 0
      %1845 = vmatprep.subr.bf16.mxu0 0
      %1846 = vmatpush2.bf16.msra.mxu0 0
      %1847 = vmatprep.subr.bf16.mxu0 0
      %1848 = vmatpush2.bf16.msra.mxu0 0
      %1849 = vmatprep.mubr.bf16.mxu0 0
      %1850 = vmatmul.mubr.bf16.gmra.mxu0 %v1812
      %v1851 = vpop.f32.mrf.mxu0
      %v1852 = vadd.f32 %v1797, %v1851
      %v1853 = vpop.f32.mrf.mxu0
      %v1854 = vpop.f32.mrf.mxu0
      %v1855 = vadd.f32 %v1797, %v1854
      %v1856 = vpop.f32.mrf.mxu0
      %1857 = vmatprep.mubr.bf16.mxu0 0
      %1858 = vmatmul.mubr.bf16.gmra.mxu0 %v1815
      %v1859 = vpop.f32.mrf.mxu0
      %v1860 = vadd.f32 %v1797, %v1859
      %v1861 = vpop.f32.mrf.mxu0
      %v1862 = vpop.f32.mrf.mxu0
      %v1863 = vadd.f32 %v1797, %v1862
      %v1864 = vpop.f32.mrf.mxu0
      %1865 = vdwg.mxu0
      %v1866 = vmul.f32 %v1852, 0.5
      %v1867 = vmul.f32 %v1855, 0.5
      %v1868 = vmul.f32 %v1860, 0.5
      %v1869 = vmul.f32 %v1863, 0.5
      %v1870 = vmul.f32 %v1852, 0.70710677
      %v1871 = vmul.f32 %v1855, 0.70710677
      %v1872 = vmul.f32 %v1860, 0.70710677
      %v1873 = vmul.f32 %v1863, 0.70710677
      %v1874 = verf.f32.pop %v1870
      %v1875 = verf.f32.pop %v1871
      %v1876 = verf.f32.pop %v1872
      %v1877 = verf.f32.pop %v1873
      %v1878 = vadd.f32 %v1874, 1.0
      %v1879 = vadd.f32 %v1875, 1.0
      %v1880 = vadd.f32 %v1876, 1.0
      %v1881 = vadd.f32 %v1877, 1.0
      %v1882 = vmul.f32 %v1866, %v1878
      %v1883 = vmul.f32 %v1867, %v1879
      %v1884 = vmul.f32 %v1868, %v1880
      %v1885 = vmul.f32 %v1869, %v1881
      %v1886 = vpack.c.bf16 %v1883, %v1882
      %v1887 = vpack.c.bf16 %v1885, %v1884
      %v1888 = vld [vmem:[%s349] sm:$0xf]
      %v1889 = vld [vmem:[%s349 + $0x4] sm:$0xf]
      %v1890 = vld [vmem:[%s349 + $0x8] sm:$0xf]
      %v1891 = vld [vmem:[%s349 + $0xc] sm:$0xf]
      %v1892 = vld [vmem:[%s349 + $0x10] sm:$0xf]
      %v1893 = vld [vmem:[%s349 + $0x14] sm:$0xf]
      %v1894 = vld [vmem:[%s349 + $0x18] sm:$0xf]
      %v1895 = vld [vmem:[%s349 + $0x1c] sm:$0xf]
      %v1904 = vunpack.c.l.b16 %v1888
      %v1905 = vunpack.c.l.b16 %v1889
      %v1906 = vunpack.c.l.b16 %v1890
      %v1907 = vunpack.c.l.b16 %v1891
      %v1908 = vunpack.c.l.b16 %v1892
      %v1909 = vunpack.c.l.b16 %v1893
      %v1910 = vunpack.c.l.b16 %v1894
      %v1911 = vunpack.c.l.b16 %v1895
      %v1912 = vpack.c.b16 %v1905, %v1904
      %v1913 = vpack.c.b16 %v1907, %v1906
      %v1914 = vpack.c.b16 %v1909, %v1908
      %v1915 = vpack.c.b16 %v1911, %v1910
      %1920 = vrot.lane.b32.xlu0 %v1797, 64
      %v1921 = vpop.permute.xlu0 %1920
      %vm1923 = vcmask 523264
      %v1925 = vsel %vm1923, %v1886, 0
      %v1928 = vsel %vm1923, %v1887, 0
      %1930 = vmatprep.subr.bf16.mxu0 0
      %1931 = vmatpush1.bf16.msra.mxu0 0
      %1932 = vmatprep.subr.bf16.mxu0 0
      %1933 = vmatpush1.bf16.msra.mxu0 0
      %1934 = vmatprep.subr.bf16.mxu0 0
      %1935 = vmatpush1.bf16.msra.mxu0 0
      %1936 = vmatprep.subr.bf16.mxu0 0
      %1937 = vmatpush1.bf16.msra.mxu0 0
      %1938 = vmatprep.subr.bf16.mxu0 0
      %1939 = vmatpush1.bf16.msra.mxu0 %v1915
      %1940 = vmatprep.subr.bf16.mxu0 0
      %1941 = vmatpush1.bf16.msra.mxu0 %v1914
      %1942 = vmatprep.subr.bf16.mxu0 0
      %1943 = vmatpush1.bf16.msra.mxu0 %v1913
      %1944 = vmatprep.subr.bf16.mxu0 0
      %1945 = vmatpush1.bf16.msra.mxu0 %v1912
      %1946 = vmatprep.subr.bf16.mxu0 0
      %1947 = vmatpush2.bf16.msra.mxu0 0
      %1948 = vmatprep.subr.bf16.mxu0 0
      %1949 = vmatpush2.bf16.msra.mxu0 0
      %1950 = vmatprep.subr.bf16.mxu0 0
      %1951 = vmatpush2.bf16.msra.mxu0 0
      %1952 = vmatprep.subr.bf16.mxu0 0
      %1953 = vmatpush2.bf16.msra.mxu0 0
      %1954 = vmatprep.subr.bf16.mxu0 0
      %1955 = vmatpush2.bf16.msra.mxu0 0
      %1956 = vmatprep.subr.bf16.mxu0 0
      %1957 = vmatpush2.bf16.msra.mxu0 0
      %1958 = vmatprep.subr.bf16.mxu0 0
      %1959 = vmatpush2.bf16.msra.mxu0 0
      %1960 = vmatprep.subr.bf16.mxu0 0
      %1961 = vmatpush2.bf16.msra.mxu0 0
      %1962 = vmatprep.mubr.bf16.mxu0 0
      %1963 = vmatmul.mubr.bf16.gmra.mxu0 %v1925
      %v1964 = vpop.f32.mrf.mxu0
      %v1965 = vadd.f32 %v1921, %v1964
      %v1966 = vpop.f32.mrf.mxu0
      %v1967 = vpop.f32.mrf.mxu0
      %v1968 = vadd.f32 %v1921, %v1967
      %v1969 = vpop.f32.mrf.mxu0
      %1970 = vmatprep.mubr.bf16.mxu0 0
      %1971 = vmatmul.mubr.bf16.gmra.mxu0 %v1928
      %v1972 = vpop.f32.mrf.mxu0
      %v1973 = vadd.f32 %v1921, %v1972
      %v1974 = vpop.f32.mrf.mxu0
      %v1975 = vpop.f32.mrf.mxu0
      %v1976 = vadd.f32 %v1921, %v1975
      %v1977 = vpop.f32.mrf.mxu0
      %1978 = vdwg.mxu0
      %v1979 = vadd.f32 %v1783, %v1965
      %v1980 = vadd.f32 %v1784, %v1968
      %v1981 = vadd.f32 %v1785, %v1973
      %v1982 = vadd.f32 %v1786, %v1976
      %1983 = vst.msk [vmem:[#allocation2] sm:$0xff] %vm397, %v1979
      %1984 = vst.msk [vmem:[#allocation2 + $0x8] sm:$0xff] %vm397, %v1980
      %1985 = vst.msk [vmem:[#allocation2 + $0x10] sm:$0xff] %vm397, %v1981
      %1986 = vst.msk [vmem:[#allocation2 + $0x18] sm:$0xff] %vm397, %v1982
      %v1987 = vld [vmem:[#allocation2] sm:$0xff]
      %v1988 = vld [vmem:[#allocation2 + $0x8] sm:$0xff]
      %v1989 = vld [vmem:[#allocation2 + $0x10] sm:$0xff]
      %v1990 = vld [vmem:[#allocation2 + $0x18] sm:$0xff]
      %v1991 = vsel %vm397, %v1987, 0.0
      %v1992 = vsel %vm397, %v1989, 0.0
      %v1993 = vadd.f32 %v1991, %v1992
      %1994 = vadd.xlane.f32.xlu0 %v1993
      %v1995 = vpop.xlane.xlu0 %1994
      %v1996 = vsel %vm397, %v1988, 0.0
      %v1997 = vsel %vm397, %v1990, 0.0
      %v1998 = vadd.f32 %v1996, %v1997
      %1999 = vadd.xlane.f32.xlu0 %v1998
      %v2000 = vpop.xlane.xlu0 %1999
      %v2001 = vmul.f32 %v1995, %v1718
      %v2002 = vmul.f32 %v2000, %v1718
      %v2003 = vsub.f32 %v1987, %v2001
      %v2004 = vsub.f32 %v1988, %v2002
      %v2005 = vsub.f32 %v1989, %v2001
      %v2006 = vsub.f32 %v1990, %v2002
      %v2007 = vmul.f32 %v2003, %v2003
      %v2008 = vmul.f32 %v2004, %v2004
      %v2009 = vmul.f32 %v2005, %v2005
      %v2010 = vmul.f32 %v2006, %v2006
      %v2011 = vsel %vm397, %v2007, 0.0
      %v2012 = vsel %vm397, %v2009, 0.0
      %v2013 = vadd.f32 %v2011, %v2012
      %2014 = vadd.xlane.f32.xlu0 %v2013
      %v2015 = vpop.xlane.xlu0 %2014
      %v2016 = vsel %vm397, %v2008, 0.0
      %v2017 = vsel %vm397, %v2010, 0.0
      %v2018 = vadd.f32 %v2016, %v2017
      %2019 = vadd.xlane.f32.xlu0 %v2018
      %v2020 = vpop.xlane.xlu0 %2019
      %v2021 = vmul.f32 %v2015, %v1718
      %v2022 = vmul.f32 %v2020, %v1718
      %v2023 = vadd.f32 %v2021, 1e-05
      %v2024 = vadd.f32 %v2022, 1e-05
      %v2025 = vrsqrt.pop %v2023
      %v2026 = vrsqrt.pop %v2024
      %v2027 = vmul.f32 %v372, %v2025
      %v2028 = vmul.f32 %v373, %v2026
      %2030 = vset.pattern.permute.xlu0 2
      %2031 = vperm.xlu0 %2030, %v2027
      %v2032 = vpop.permute.xlu0 %2031
      %2035 = vset.pattern.permute.xlu0 2
      %2036 = vperm.xlu0 %2035, %v2028
      %v2037 = vpop.permute.xlu0 %2036
      %v2039 = vmul.f32 %v2003, %v2032
      %v2040 = vmul.f32 %v2004, %v2037
      %v2041 = vmul.f32 %v2005, %v2032
      %v2042 = vmul.f32 %v2006, %v2037
      %2044 = vset.pattern.permute.xlu0 3
      %2045 = vperm.xlu0 %2044, %v372
      %v2046 = vpop.permute.xlu0 %2045
      %2049 = vset.pattern.permute.xlu0 3
      %2050 = vperm.xlu0 %2049, %v373
      %v2051 = vpop.permute.xlu0 %2050
      %v2053 = vadd.f32 %v2039, %v2046
      %v2054 = vadd.f32 %v2040, %v2051
      %v2055 = vadd.f32 %v2041, %v2046
      %v2056 = vadd.f32 %v2042, %v2051
      %2057 = vst.msk [vmem:[%s7] sm:$0xff] %vm397, %v2053
      %2058 = vst.msk [vmem:[%s7 + $0x8] sm:$0xff] %vm397, %v2054
      %2059 = vst.msk [vmem:[%s7 + $0x10] sm:$0xff] %vm397, %v2055
      %2060 = vst.msk [vmem:[%s7 + $0x18] sm:$0xff] %vm397, %v2056
      // Predicated region
      $region53: #{transformer_tsai_forward.1} parent=47 // pred_check
        %p2061 = pneg %p208
      $region54: #{transformer_tsai_forward.1} parent=47 // pred_check_branch
        %2063 = sbr.rel (%p2061) target = $region56
      $region55: #{transformer_tsai_forward.1} parent=47 // pred_region
        _
      $region56: #{transformer_tsai_forward.1} parent=47 // pred_fallthru
        _
      // Predicated region
      $region57: #{transformer_tsai_forward.1} parent=47 // pred_check
        %p2064 = pneg %p208
      $region58: #{transformer_tsai_forward.1} parent=47 // pred_check_branch
        %2066 = sbr.rel (%p2064) target = $region60
      $region59: #{transformer_tsai_forward.1} parent=47 // pred_region
        _
      $region60: #{transformer_tsai_forward.1} parent=47 // pred_fallthru
        _
    $region48: #{transformer_tsai_forward.1} parent=5 // pred_fallthru
      _
    %p2067 = scmp.le.s32.totalorder 2, %s13
    // Predicated region
    $region61: #{transformer_tsai_forward.1} parent=5 // pred_check
      %p2068 = pneg %p2067
    $region62: #{transformer_tsai_forward.1} parent=5 // pred_check_branch
      %2070 = sbr.rel (%p2068) target = $region64
    $region63: #{transformer_tsai_forward.1} parent=5 // pred_region
      %s2071 = ssub.s32 %s13, 2
    $region64: #{transformer_tsai_forward.1} parent=5 // pred_fallthru
      _
  $region6: #{transformer_tsai_forward.1} parent=0 // loop_footer
    %s17 = sadd.s32 1, %s13
  $region7: #{transformer_tsai_forward.1} parent=0 // loop_footer_branch
    %12 = sbr.rel target = $region3
  $region8: #{transformer_tsai_forward.1} parent=0 // loop_exit
    _

</llo_original>
